<compile_context>
chip_gen: v7x
topology: tpu7x:2x2x1
jax: 0.10.0
libtpu: 0.0.40
codegen_flags: <defaults>
</compile_context>

<pallas_src>
import functools

import jax
import jax.numpy as jnp
from jax.experimental import pallas as pl
from jax.experimental.pallas import tpu as pltpu


def _cbam1d_kernel(x_ref, fc1_w3_ref, fc1_b_ref, fc2_wT_ref, fc2_b_ref,
                   conv_w_ref, out_ref, *, kernel_size):
    """One (Bb, C, T) block: channel attention then spatial attention."""
    x = x_ref[...].astype(jnp.float32)                      # (Bb, C, T)
    Bb, C, T = x.shape
    fmax = jnp.finfo(jnp.float32).max
    K = kernel_size
    pad = K // 2

    # ---------------- Channel attention (two-pass stats over T) ----------------
    mean_c = jnp.sum(x, axis=2) / T                          # (Bb, C)
    max_c = jnp.max(x, axis=2)                               # (Bb, C)
    cx = x - mean_c[:, :, None]                              # centered -> stable var
    var_c = jnp.sum(cx * cx, axis=2) / (T - 1)               # unbiased (torch.std)
    std_c = jnp.clip(jnp.sqrt(jnp.maximum(var_c, 0.0)), 1e-10, fmax)

    # fc1 applied as three (C, H) slabs: no lane-axis concat of the stats.
    w1 = fc1_w3_ref[...]                                     # (3, C, H)
    h = (jnp.dot(mean_c, w1[0], preferred_element_type=jnp.float32)
         + jnp.dot(std_c, w1[1], preferred_element_type=jnp.float32)
         + jnp.dot(max_c, w1[2], preferred_element_type=jnp.float32))
    h = jnp.maximum(h + fc1_b_ref[...], 0.0)                 # (Bb, H)  ReLU
    ca = jnp.dot(h, fc2_wT_ref[...], preferred_element_type=jnp.float32)
    ca = jnp.clip(jax.nn.sigmoid(ca + fc2_b_ref[...]), 1e-06, fmax)   # (Bb, C)

    out1 = ca[:, :, None] * x                                # (Bb, C, T)

    # ---------------- Spatial attention (two-pass stats over C) ----------------
    mean_s = jnp.sum(out1, axis=1) / C                       # (Bb, T)
    max_s = jnp.max(out1, axis=1)                            # (Bb, T)
    cs = out1 - mean_s[:, None, :]
    var_s = jnp.sum(cs * cs, axis=1) / (C - 1)
    std_s = jnp.clip(jnp.sqrt(jnp.maximum(var_s, 0.0)), 1e-10, fmax)

    # Conv1d(3 -> 1, K, padding=K//2, bias=False): stats stacked on a leading axis
    # so each tap is ONE lane roll (XLU) + ONE boundary mask + three scalar FMAs
    # (VPU).  No padded temp, no misaligned slices, taps live in SMEM as scalars.
    stats = jnp.stack([mean_s, std_s, max_s], axis=0)        # (3, Bb, T)
    pos = jax.lax.broadcasted_iota(jnp.int32, (1, T), 1)
    acc = jnp.zeros((Bb, T), dtype=jnp.float32)
    for k in range(K):                                       # static unroll
        shift = pad - k                                      # out[t] needs s[t + k - pad]
        w_avg = conv_w_ref[0 * K + k]                        # SMEM scalars
        w_std = conv_w_ref[1 * K + k]
        w_max = conv_w_ref[2 * K + k]
        if shift == 0:
            s_k = stats
        else:
            valid = (pos >= shift) & (pos < T + shift)       # zero-padding region
            s_k = jnp.where(valid[None], pltpu.roll(stats, shift % T, axis=2), 0.0)
        acc = acc + w_avg * s_k[0] + w_std * s_k[1] + w_max * s_k[2]

    sa = jnp.clip(jax.nn.sigmoid(acc), 1e-06, fmax)          # (Bb, T)
    # TODO(synk): for bf16 inputs on v6e/v7x the epilogue could stay in bf16 VPU math.
    out_ref[...] = (sa[:, None, :] * out1).astype(out_ref.dtype)


def _pick_batch_block(B, C, T, itemsize, vmem_budget,
                      target_step_bytes=2 << 20, min_steps=8):
    """Batch rows per grid step.

    Large enough that each step moves >= target_step_bytes of HBM traffic (in+out,
    amortizing the ~0.35 us per-step overhead), small enough that the double-
    buffered block plus ~6x block of in-kernel f32 temporaries fits the VMEM
    budget, and — when the batch allows — leaving >= min_steps grid steps so the
    pipeline and both v7x TensorCores have work."""
    io_per_row = 2 * C * T * itemsize                     # in + out, one buffer each
    f32_per_row = C * T * 4
    vmem_per_row = 2 * io_per_row + 6 * f32_per_row       # dbl-buffered io + temps
    bb_vmem = max(1, vmem_budget // vmem_per_row)
    bb_traffic = max(1, -(-target_step_bytes // io_per_row))   # ceil
    bb = min(bb_vmem, B)
    # Prefer >= min_steps steps, but never drop below the per-step traffic target.
    bb_cap_steps = max(bb_traffic, -(-B // min_steps))
    bb = min(bb, bb_cap_steps)
    return max(1, bb)


def cbam1d(x, fc1_w, fc1_b, fc2_w, fc2_b, conv_w, *, kernel_size=7):
    """x: (B, C, T).  Parameters in PyTorch layouts:
       fc1_w (H, 3C), fc1_b (H,), fc2_w (C, H), fc2_b (C,), conv_w (1, 3, K)."""
    B, C, T = x.shape
    H = fc1_w.shape[0]
    K = kernel_size

    # TODO(synk): a very long T (one (1, C, T) block exceeding the VMEM budget)
    # needs a T-tiling grid axis with cross-tile stat carries; likewise pad/mask
    # here if production C/T are not multiples of (8, 128).

    # fc1.weight^T (3C, H) reshaped to (3, C, H): [avg, std, max] slabs.
    fc1_w3 = jnp.asarray(fc1_w).T.reshape(3, C, H)
    fc2_wT = jnp.asarray(fc2_w).T                            # (H, C)
    fc1_b2 = jnp.asarray(fc1_b).reshape(1, H)
    fc2_b2 = jnp.asarray(fc2_b).reshape(1, C)
    conv_w_flat = jnp.asarray(conv_w).reshape(3 * K).astype(jnp.float32)

    itemsize = jnp.dtype(x.dtype).itemsize

    # Per-generation VMEM budget (v7x: 64 MiB physical/TC vs 128 MiB on v5e/v6e);
    # set the scoped limit explicitly instead of relying on the 16/32 MiB default.
    try:
        phys_vmem = int(pltpu.get_tpu_info().vmem_capacity_bytes)
    except Exception:
        phys_vmem = 64 * 1024 * 1024                         # conservative (v7x)
    vmem_limit = int(min(phys_vmem * 3 // 4, 96 * 1024 * 1024))

    Bb = _pick_batch_block(B, C, T, itemsize, vmem_limit)
    grid_b = pl.cdiv(B, Bb)
    B_pad = grid_b * Bb
    x_in = x if B_pad == B else jnp.pad(x, ((0, B_pad - B), (0, 0), (0, 0)))

    cost = pl.CostEstimate(
        flops=int(30 * B_pad * C * T),
        transcendentals=int(2 * B_pad * (C + T)),
        bytes_accessed=int(2 * B_pad * C * T * itemsize),
    )

    kernel = functools.partial(_cbam1d_kernel, kernel_size=K)
    out = pl.pallas_call(
        kernel,
        out_shape=jax.ShapeDtypeStruct((B_pad, C, T), x.dtype),
        grid=(grid_b,),
        in_specs=[
            pl.BlockSpec((Bb, C, T), lambda b: (b, 0, 0)),               # x block
            pl.BlockSpec((3, C, H), lambda b: (0, 0, 0)),                # fc1 slabs
            pl.BlockSpec((1, H), lambda b: (0, 0)),                      # fc1.bias
            pl.BlockSpec((H, C), lambda b: (0, 0)),                      # fc2.weight^T
            pl.BlockSpec((1, C), lambda b: (0, 0)),                      # fc2.bias
            pl.BlockSpec(memory_space=pltpu.MemorySpace.SMEM),           # conv taps
        ],
        out_specs=pl.BlockSpec((Bb, C, T), lambda b: (b, 0, 0)),
        compiler_params=pltpu.CompilerParams(
            dimension_semantics=("parallel",),
            vmem_limit_bytes=vmem_limit,
        ),
        cost_estimate=cost,
    )(x_in, fc1_w3, fc1_b2, fc2_wT, fc2_b2, conv_w_flat)

    return out if B_pad == B else out[:B]


def _reference(x, fc1_w, fc1_b, fc2_w, fc2_b, conv_w, kernel_size=7):
    """Plain-JAX replica of the PyTorch forward for verification."""
    fmax = jnp.finfo(x.dtype).max
    # channel attention
    avg = jnp.mean(x, axis=2)
    std = jnp.clip(jnp.std(x, axis=2, ddof=1), 1e-10, fmax)
    mx = jnp.max(x, axis=2)
    feats = jnp.concatenate([avg, std, mx], axis=1)                     # (B, 3C)
    h = jax.nn.relu(feats @ fc1_w.T + fc1_b)
    ca = jnp.clip(jax.nn.sigmoid(h @ fc2_w.T + fc2_b), 1e-06, fmax)[:, :, None]
    out = ca * x
    # spatial attention
    avg_s = jnp.mean(out, axis=1, keepdims=True)
    std_s = jnp.clip(jnp.std(out, axis=1, keepdims=True, ddof=1), 1e-10, fmax)
    max_s = jnp.max(out, axis=1, keepdims=True)
    s3 = jnp.concatenate([avg_s, std_s, max_s], axis=1)                 # (B, 3, T)
    conv = jax.lax.conv_general_dilated(
        s3, conv_w, window_strides=(1,), padding=[(kernel_size // 2,) * 2],
        dimension_numbers=("NCH", "OIH", "NCH"))
    sa = jnp.clip(jax.nn.sigmoid(conv), 1e-06, fmax)
    return sa * out


if __name__ == "__main__":
    C, ratio, K = 32, 16, 7
    H = C // ratio

    key = jax.random.PRNGKey(0)
    kx, k1w, k1b, k2w, k2b, kcw, kx2 = jax.random.split(key, 7)

    # Deterministic synthetic parameters (PyTorch shapes).
    fc1_w = jax.random.normal(k1w, (H, 3 * C), dtype=jnp.float32) * 0.1   # Linear(3C -> H).weight
    fc1_b = jax.random.normal(k1b, (H,), dtype=jnp.float32) * 0.1         # Linear(3C -> H).bias
    fc2_w = jax.random.normal(k2w, (C, H), dtype=jnp.float32) * 0.1       # Linear(H -> C).weight
    fc2_b = jax.random.normal(k2b, (C,), dtype=jnp.float32) * 0.1         # Linear(H -> C).bias
    conv_w = jax.random.normal(kcw, (1, 3, K), dtype=jnp.float32) * 0.1   # Conv1d(3 -> 1, K).weight

    # Test 1: small single-block case.
    B, T = 4, 128
    x = jax.random.normal(kx, (B, C, T), dtype=jnp.float32)
    out = jax.block_until_ready(cbam1d(x, fc1_w, fc1_b, fc2_w, fc2_b, conv_w, kernel_size=K))
    ref = _reference(x, fc1_w, fc1_b, fc2_w, fc2_b, conv_w, kernel_size=K)
    assert out.shape == (B, C, T)
    assert jnp.allclose(out, ref, atol=2e-3, rtol=2e-3), "mismatch vs JAX reference (small)"

    # Test 2: batch not divisible by the block -> exercises padding + multi-step grid.
    B2, T2 = 70, 256
    x2 = jax.random.normal(kx2, (B2, C, T2), dtype=jnp.float32)
    out2 = jax.block_until_ready(cbam1d(x2, fc1_w, fc1_b, fc2_w, fc2_b, conv_w, kernel_size=K))
    ref2 = _reference(x2, fc1_w, fc1_b, fc2_w, fc2_b, conv_w, kernel_size=K)
    assert out2.shape == (B2, C, T2)
    assert jnp.allclose(out2, ref2, atol=2e-3, rtol=2e-3), "mismatch vs JAX reference (padded)"

    print("KERNEL_OK")
</pallas_src>

<mosaic_0001>
module attributes {stable_mosaic.version = 11 : i64} {
  func.func @_cbam1d_kernel(%arg0: i32, %arg1: memref<4x32x128xf32, #tpu.memory_space<vmem>>, %arg2: memref<3x32x2xf32, #tpu.memory_space<vmem>>, %arg3: memref<1x2xf32, #tpu.memory_space<vmem>>, %arg4: memref<2x32xf32, #tpu.memory_space<vmem>>, %arg5: memref<1x32xf32, #tpu.memory_space<vmem>>, %arg6: memref<21xf32, #tpu.memory_space<smem>>, %arg7: memref<4x32x128xf32, #tpu.memory_space<vmem>>) attributes {dimension_semantics = [#tpu.dimension_semantics<parallel>], iteration_bounds = array<i64: 1>, scalar_prefetch = 0 : i64, scratch_operands = 0 : i64, tpu.core_type = #tpu.core_type<tc>, window_params = [{transform_indices = @transform_0, window_bounds = array<i64: 4, 32, 128>}, {pipeline_mode = #tpu.pipeline_mode<synchronous>, transform_indices = @transform_1, window_bounds = array<i64: 3, 32, 2>}, {pipeline_mode = #tpu.pipeline_mode<synchronous>, transform_indices = @transform_2, window_bounds = array<i64: 1, 2>}, {pipeline_mode = #tpu.pipeline_mode<synchronous>, transform_indices = @transform_3, window_bounds = array<i64: 2, 32>}, {pipeline_mode = #tpu.pipeline_mode<synchronous>, transform_indices = @transform_4, window_bounds = array<i64: 1, 32>}, {transform_indices = @transform_5, window_bounds = array<i64: 21>}, {transform_indices = @transform_6, window_bounds = array<i64: 4, 32, 128>}]} {
    %c0 = arith.constant 0 : index
    %c0_0 = arith.constant 0 : index
    %c0_1 = arith.constant 0 : index
    %0 = vector.load %arg1[%c0, %c0_0, %c0_1] : memref<4x32x128xf32, #tpu.memory_space<vmem>>, vector<4x32x128xf32>
    %cst = arith.constant dense<0.000000e+00> : vector<4x32xf32>
    %1 = vector.multi_reduction <add>, %0, %cst [2] : vector<4x32x128xf32> to vector<4x32xf32>
    %cst_2 = arith.constant 1.280000e+02 : f32
    %2 = vector.broadcast %cst_2 : f32 to vector<4x32xf32>
    %3 = arith.divf %1, %2 : vector<4x32xf32>
    %cst_3 = arith.constant dense<0xFF800000> : vector<4x32xf32>
    %4 = vector.multi_reduction <maximumf>, %0, %cst_3 [2] : vector<4x32x128xf32> to vector<4x32xf32>
    %5 = vector.shape_cast %3 : vector<4x32xf32> to vector<4x32x1xf32>
    %6 = vector.broadcast %5 : vector<4x32x1xf32> to vector<4x32x128xf32>
    %7 = arith.subf %0, %6 : vector<4x32x128xf32>
    %8 = arith.mulf %7, %7 : vector<4x32x128xf32>
    %cst_4 = arith.constant dense<0.000000e+00> : vector<4x32xf32>
    %9 = vector.multi_reduction <add>, %8, %cst_4 [2] : vector<4x32x128xf32> to vector<4x32xf32>
    %cst_5 = arith.constant 1.270000e+02 : f32
    %10 = vector.broadcast %cst_5 : f32 to vector<4x32xf32>
    %11 = arith.divf %9, %10 : vector<4x32xf32>
    %cst_6 = arith.constant 0.000000e+00 : f32
    %12 = vector.broadcast %cst_6 : f32 to vector<4x32xf32>
    %13 = arith.maximumf %11, %12 : vector<4x32xf32>
    %14 = math.sqrt %13 : vector<4x32xf32>
    %cst_7 = arith.constant 1.000000e-10 : f32
    %cst_8 = arith.constant 3.40282347E+38 : f32
    %15 = vector.broadcast %cst_7 : f32 to vector<4x32xf32>
    %16 = arith.maximumf %15, %14 : vector<4x32xf32>
    %17 = vector.broadcast %cst_8 : f32 to vector<4x32xf32>
    %18 = arith.minimumf %17, %16 : vector<4x32xf32>
    %c0_9 = arith.constant 0 : index
    %c0_10 = arith.constant 0 : index
    %c0_11 = arith.constant 0 : index
    %19 = vector.load %arg2[%c0_9, %c0_10, %c0_11] : memref<3x32x2xf32, #tpu.memory_space<vmem>>, vector<3x32x2xf32>
    %20 = vector.extract_strided_slice %19 {offsets = [0, 0, 0], sizes = [1, 32, 2], strides = [1, 1, 1]} : vector<3x32x2xf32> to vector<1x32x2xf32>
    %21 = vector.shape_cast %20 : vector<1x32x2xf32> to vector<32x2xf32>
    %cst_12 = arith.constant dense<0.000000e+00> : vector<4x2xf32>
    %22 = tpu.matmul %3, %21, %cst_12 {dimension_numbers = #tpu.dot_dimension_numbers<[1], [0], [0], [1], [0, 0, 1, 1], [], []>} : vector<4x32xf32>, vector<32x2xf32>, vector<4x2xf32> -> vector<4x2xf32>
    %23 = vector.extract_strided_slice %19 {offsets = [1, 0, 0], sizes = [1, 32, 2], strides = [1, 1, 1]} : vector<3x32x2xf32> to vector<1x32x2xf32>
    %24 = vector.shape_cast %23 : vector<1x32x2xf32> to vector<32x2xf32>
    %cst_13 = arith.constant dense<0.000000e+00> : vector<4x2xf32>
    %25 = tpu.matmul %18, %24, %cst_13 {dimension_numbers = #tpu.dot_dimension_numbers<[1], [0], [0], [1], [0, 0, 1, 1], [], []>} : vector<4x32xf32>, vector<32x2xf32>, vector<4x2xf32> -> vector<4x2xf32>
    %26 = arith.addf %22, %25 : vector<4x2xf32>
    %27 = vector.extract_strided_slice %19 {offsets = [2, 0, 0], sizes = [1, 32, 2], strides = [1, 1, 1]} : vector<3x32x2xf32> to vector<1x32x2xf32>
    %28 = vector.shape_cast %27 : vector<1x32x2xf32> to vector<32x2xf32>
    %cst_14 = arith.constant dense<0.000000e+00> : vector<4x2xf32>
    %29 = tpu.matmul %4, %28, %cst_14 {dimension_numbers = #tpu.dot_dimension_numbers<[1], [0], [0], [1], [0, 0, 1, 1], [], []>} : vector<4x32xf32>, vector<32x2xf32>, vector<4x2xf32> -> vector<4x2xf32>
    %30 = arith.addf %26, %29 : vector<4x2xf32>
    %c0_15 = arith.constant 0 : index
    %c0_16 = arith.constant 0 : index
    %31 = vector.load %arg3[%c0_15, %c0_16] : memref<1x2xf32, #tpu.memory_space<vmem>>, vector<1x2xf32>
    %32 = vector.broadcast %31 : vector<1x2xf32> to vector<4x2xf32>
    %33 = arith.addf %30, %32 : vector<4x2xf32>
    %cst_17 = arith.constant 0.000000e+00 : f32
    %34 = vector.broadcast %cst_17 : f32 to vector<4x2xf32>
    %35 = arith.maximumf %33, %34 : vector<4x2xf32>
    %c0_18 = arith.constant 0 : index
    %c0_19 = arith.constant 0 : index
    %36 = vector.load %arg4[%c0_18, %c0_19] : memref<2x32xf32, #tpu.memory_space<vmem>>, vector<2x32xf32>
    %cst_20 = arith.constant dense<0.000000e+00> : vector<4x32xf32>
    %37 = tpu.matmul %35, %36, %cst_20 {dimension_numbers = #tpu.dot_dimension_numbers<[1], [0], [0], [1], [0, 0, 1, 1], [], []>} : vector<4x2xf32>, vector<2x32xf32>, vector<4x32xf32> -> vector<4x32xf32>
    %c0_21 = arith.constant 0 : index
    %c0_22 = arith.constant 0 : index
    %38 = vector.load %arg5[%c0_21, %c0_22] : memref<1x32xf32, #tpu.memory_space<vmem>>, vector<1x32xf32>
    %39 = vector.broadcast %38 : vector<1x32xf32> to vector<4x32xf32>
    %40 = arith.addf %37, %39 : vector<4x32xf32>
    %41 = arith.negf %40 : vector<4x32xf32>
    %42 = math.exp %41 : vector<4x32xf32>
    %cst_23 = arith.constant 1.000000e+00 : f32
    %43 = vector.broadcast %cst_23 : f32 to vector<4x32xf32>
    %44 = arith.addf %43, %42 : vector<4x32xf32>
    %45 = arith.divf %43, %44 : vector<4x32xf32>
    %cst_24 = arith.constant 9.99999997E-7 : f32
    %cst_25 = arith.constant 3.40282347E+38 : f32
    %46 = vector.broadcast %cst_24 : f32 to vector<4x32xf32>
    %47 = arith.maximumf %46, %45 : vector<4x32xf32>
    %48 = vector.broadcast %cst_25 : f32 to vector<4x32xf32>
    %49 = arith.minimumf %48, %47 : vector<4x32xf32>
    %50 = vector.shape_cast %49 : vector<4x32xf32> to vector<4x32x1xf32>
    %51 = vector.broadcast %50 : vector<4x32x1xf32> to vector<4x32x128xf32>
    %52 = arith.mulf %51, %0 : vector<4x32x128xf32>
    %cst_26 = arith.constant dense<0.000000e+00> : vector<4x128xf32>
    %53 = vector.multi_reduction <add>, %52, %cst_26 [1] : vector<4x32x128xf32> to vector<4x128xf32>
    %cst_27 = arith.constant 3.200000e+01 : f32
    %54 = vector.broadcast %cst_27 : f32 to vector<4x128xf32>
    %55 = arith.divf %53, %54 : vector<4x128xf32>
    %cst_28 = arith.constant dense<0xFF800000> : vector<4x128xf32>
    %56 = vector.multi_reduction <maximumf>, %52, %cst_28 [1] : vector<4x32x128xf32> to vector<4x128xf32>
    %57 = vector.shape_cast %55 : vector<4x128xf32> to vector<4x1x128xf32>
    %58 = vector.broadcast %57 : vector<4x1x128xf32> to vector<4x32x128xf32>
    %59 = arith.subf %52, %58 : vector<4x32x128xf32>
    %60 = arith.mulf %59, %59 : vector<4x32x128xf32>
    %cst_29 = arith.constant dense<0.000000e+00> : vector<4x128xf32>
    %61 = vector.multi_reduction <add>, %60, %cst_29 [1] : vector<4x32x128xf32> to vector<4x128xf32>
    %cst_30 = arith.constant 3.100000e+01 : f32
    %62 = vector.broadcast %cst_30 : f32 to vector<4x128xf32>
    %63 = arith.divf %61, %62 : vector<4x128xf32>
    %cst_31 = arith.constant 0.000000e+00 : f32
    %64 = vector.broadcast %cst_31 : f32 to vector<4x128xf32>
    %65 = arith.maximumf %63, %64 : vector<4x128xf32>
    %66 = math.sqrt %65 : vector<4x128xf32>
    %cst_32 = arith.constant 1.000000e-10 : f32
    %cst_33 = arith.constant 3.40282347E+38 : f32
    %67 = vector.broadcast %cst_32 : f32 to vector<4x128xf32>
    %68 = arith.maximumf %67, %66 : vector<4x128xf32>
    %69 = vector.broadcast %cst_33 : f32 to vector<4x128xf32>
    %70 = arith.minimumf %69, %68 : vector<4x128xf32>
    %71 = vector.shape_cast %55 : vector<4x128xf32> to vector<1x4x128xf32>
    %72 = vector.shape_cast %70 : vector<4x128xf32> to vector<1x4x128xf32>
    %73 = vector.shape_cast %56 : vector<4x128xf32> to vector<1x4x128xf32>
    %74 = tpu.concatenate %71, %72, %73 in 0 : vector<1x4x128xf32>, vector<1x4x128xf32>, vector<1x4x128xf32> -> vector<3x4x128xf32>
    %75 = tpu.iota {dimensions = array<i32: 1>} : vector<1x128xi32>
    %cst_34 = arith.constant 0.000000e+00 : f32
    %76 = vector.broadcast %cst_34 : f32 to vector<4x128xf32>
    %c0_35 = arith.constant 0 : index
    %77 = memref.load %arg6[%c0_35] : memref<21xf32, #tpu.memory_space<smem>>
    %c7 = arith.constant 7 : index
    %78 = memref.load %arg6[%c7] : memref<21xf32, #tpu.memory_space<smem>>
    %c14 = arith.constant 14 : index
    %79 = memref.load %arg6[%c14] : memref<21xf32, #tpu.memory_space<smem>>
    %c3_i32 = arith.constant 3 : i32
    %80 = vector.broadcast %c3_i32 : i32 to vector<1x128xi32>
    %81 = arith.cmpi sge, %75, %80 : vector<1x128xi32>
    %c131_i32 = arith.constant 131 : i32
    %82 = vector.broadcast %c131_i32 : i32 to vector<1x128xi32>
    %83 = arith.cmpi slt, %75, %82 : vector<1x128xi32>
    %84 = arith.andi %81, %83 : vector<1x128xi1>
    %85 = vector.shape_cast %84 : vector<1x128xi1> to vector<1x1x128xi1>
    %c3_i32_36 = arith.constant 3 : i32
    %86 = tpu.dynamic_rotate %74 by %c3_i32_36 dim 2 : vector<3x4x128xf32>, i32 -> vector<3x4x128xf32>
    %cst_37 = arith.constant 0.000000e+00 : f32
    %87 = vector.shape_cast %85 : vector<1x1x128xi1> to vector<1x1x128xi1>
    %88 = vector.broadcast %87 : vector<1x1x128xi1> to vector<3x4x128xi1>
    %89 = vector.broadcast %cst_37 : f32 to vector<3x4x128xf32>
    %90 = arith.select %88, %86, %89 : vector<3x4x128xi1>, vector<3x4x128xf32>
    %91 = vector.extract_strided_slice %90 {offsets = [0, 0, 0], sizes = [1, 4, 128], strides = [1, 1, 1]} : vector<3x4x128xf32> to vector<1x4x128xf32>
    %92 = vector.shape_cast %91 : vector<1x4x128xf32> to vector<4x128xf32>
    %93 = vector.broadcast %77 : f32 to vector<4x128xf32>
    %94 = arith.mulf %93, %92 : vector<4x128xf32>
    %95 = arith.addf %76, %94 : vector<4x128xf32>
    %96 = vector.extract_strided_slice %90 {offsets = [1, 0, 0], sizes = [1, 4, 128], strides = [1, 1, 1]} : vector<3x4x128xf32> to vector<1x4x128xf32>
    %97 = vector.shape_cast %96 : vector<1x4x128xf32> to vector<4x128xf32>
    %98 = vector.broadcast %78 : f32 to vector<4x128xf32>
    %99 = arith.mulf %98, %97 : vector<4x128xf32>
    %100 = arith.addf %95, %99 : vector<4x128xf32>
    %101 = vector.extract_strided_slice %90 {offsets = [2, 0, 0], sizes = [1, 4, 128], strides = [1, 1, 1]} : vector<3x4x128xf32> to vector<1x4x128xf32>
    %102 = vector.shape_cast %101 : vector<1x4x128xf32> to vector<4x128xf32>
    %103 = vector.broadcast %79 : f32 to vector<4x128xf32>
    %104 = arith.mulf %103, %102 : vector<4x128xf32>
    %105 = arith.addf %100, %104 : vector<4x128xf32>
    %c1 = arith.constant 1 : index
    %106 = memref.load %arg6[%c1] : memref<21xf32, #tpu.memory_space<smem>>
    %c8 = arith.constant 8 : index
    %107 = memref.load %arg6[%c8] : memref<21xf32, #tpu.memory_space<smem>>
    %c15 = arith.constant 15 : index
    %108 = memref.load %arg6[%c15] : memref<21xf32, #tpu.memory_space<smem>>
    %c2_i32 = arith.constant 2 : i32
    %109 = vector.broadcast %c2_i32 : i32 to vector<1x128xi32>
    %110 = arith.cmpi sge, %75, %109 : vector<1x128xi32>
    %c130_i32 = arith.constant 130 : i32
    %111 = vector.broadcast %c130_i32 : i32 to vector<1x128xi32>
    %112 = arith.cmpi slt, %75, %111 : vector<1x128xi32>
    %113 = arith.andi %110, %112 : vector<1x128xi1>
    %114 = vector.shape_cast %113 : vector<1x128xi1> to vector<1x1x128xi1>
    %c2_i32_38 = arith.constant 2 : i32
    %115 = tpu.dynamic_rotate %74 by %c2_i32_38 dim 2 : vector<3x4x128xf32>, i32 -> vector<3x4x128xf32>
    %cst_39 = arith.constant 0.000000e+00 : f32
    %116 = vector.shape_cast %114 : vector<1x1x128xi1> to vector<1x1x128xi1>
    %117 = vector.broadcast %116 : vector<1x1x128xi1> to vector<3x4x128xi1>
    %118 = vector.broadcast %cst_39 : f32 to vector<3x4x128xf32>
    %119 = arith.select %117, %115, %118 : vector<3x4x128xi1>, vector<3x4x128xf32>
    %120 = vector.extract_strided_slice %119 {offsets = [0, 0, 0], sizes = [1, 4, 128], strides = [1, 1, 1]} : vector<3x4x128xf32> to vector<1x4x128xf32>
    %121 = vector.shape_cast %120 : vector<1x4x128xf32> to vector<4x128xf32>
    %122 = vector.broadcast %106 : f32 to vector<4x128xf32>
    %123 = arith.mulf %122, %121 : vector<4x128xf32>
    %124 = arith.addf %105, %123 : vector<4x128xf32>
    %125 = vector.extract_strided_slice %119 {offsets = [1, 0, 0], sizes = [1, 4, 128], strides = [1, 1, 1]} : vector<3x4x128xf32> to vector<1x4x128xf32>
    %126 = vector.shape_cast %125 : vector<1x4x128xf32> to vector<4x128xf32>
    %127 = vector.broadcast %107 : f32 to vector<4x128xf32>
    %128 = arith.mulf %127, %126 : vector<4x128xf32>
    %129 = arith.addf %124, %128 : vector<4x128xf32>
    %130 = vector.extract_strided_slice %119 {offsets = [2, 0, 0], sizes = [1, 4, 128], strides = [1, 1, 1]} : vector<3x4x128xf32> to vector<1x4x128xf32>
    %131 = vector.shape_cast %130 : vector<1x4x128xf32> to vector<4x128xf32>
    %132 = vector.broadcast %108 : f32 to vector<4x128xf32>
    %133 = arith.mulf %132, %131 : vector<4x128xf32>
    %134 = arith.addf %129, %133 : vector<4x128xf32>
    %c2 = arith.constant 2 : index
    %135 = memref.load %arg6[%c2] : memref<21xf32, #tpu.memory_space<smem>>
    %c9 = arith.constant 9 : index
    %136 = memref.load %arg6[%c9] : memref<21xf32, #tpu.memory_space<smem>>
    %c16 = arith.constant 16 : index
    %137 = memref.load %arg6[%c16] : memref<21xf32, #tpu.memory_space<smem>>
    %c1_i32 = arith.constant 1 : i32
    %138 = vector.broadcast %c1_i32 : i32 to vector<1x128xi32>
    %139 = arith.cmpi sge, %75, %138 : vector<1x128xi32>
    %c129_i32 = arith.constant 129 : i32
    %140 = vector.broadcast %c129_i32 : i32 to vector<1x128xi32>
    %141 = arith.cmpi slt, %75, %140 : vector<1x128xi32>
    %142 = arith.andi %139, %141 : vector<1x128xi1>
    %143 = vector.shape_cast %142 : vector<1x128xi1> to vector<1x1x128xi1>
    %c1_i32_40 = arith.constant 1 : i32
    %144 = tpu.dynamic_rotate %74 by %c1_i32_40 dim 2 : vector<3x4x128xf32>, i32 -> vector<3x4x128xf32>
    %cst_41 = arith.constant 0.000000e+00 : f32
    %145 = vector.shape_cast %143 : vector<1x1x128xi1> to vector<1x1x128xi1>
    %146 = vector.broadcast %145 : vector<1x1x128xi1> to vector<3x4x128xi1>
    %147 = vector.broadcast %cst_41 : f32 to vector<3x4x128xf32>
    %148 = arith.select %146, %144, %147 : vector<3x4x128xi1>, vector<3x4x128xf32>
    %149 = vector.extract_strided_slice %148 {offsets = [0, 0, 0], sizes = [1, 4, 128], strides = [1, 1, 1]} : vector<3x4x128xf32> to vector<1x4x128xf32>
    %150 = vector.shape_cast %149 : vector<1x4x128xf32> to vector<4x128xf32>
    %151 = vector.broadcast %135 : f32 to vector<4x128xf32>
    %152 = arith.mulf %151, %150 : vector<4x128xf32>
    %153 = arith.addf %134, %152 : vector<4x128xf32>
    %154 = vector.extract_strided_slice %148 {offsets = [1, 0, 0], sizes = [1, 4, 128], strides = [1, 1, 1]} : vector<3x4x128xf32> to vector<1x4x128xf32>
    %155 = vector.shape_cast %154 : vector<1x4x128xf32> to vector<4x128xf32>
    %156 = vector.broadcast %136 : f32 to vector<4x128xf32>
    %157 = arith.mulf %156, %155 : vector<4x128xf32>
    %158 = arith.addf %153, %157 : vector<4x128xf32>
    %159 = vector.extract_strided_slice %148 {offsets = [2, 0, 0], sizes = [1, 4, 128], strides = [1, 1, 1]} : vector<3x4x128xf32> to vector<1x4x128xf32>
    %160 = vector.shape_cast %159 : vector<1x4x128xf32> to vector<4x128xf32>
    %161 = vector.broadcast %137 : f32 to vector<4x128xf32>
    %162 = arith.mulf %161, %160 : vector<4x128xf32>
    %163 = arith.addf %158, %162 : vector<4x128xf32>
    %c3 = arith.constant 3 : index
    %164 = memref.load %arg6[%c3] : memref<21xf32, #tpu.memory_space<smem>>
    %c10 = arith.constant 10 : index
    %165 = memref.load %arg6[%c10] : memref<21xf32, #tpu.memory_space<smem>>
    %c17 = arith.constant 17 : index
    %166 = memref.load %arg6[%c17] : memref<21xf32, #tpu.memory_space<smem>>
    %167 = vector.extract_strided_slice %74 {offsets = [0, 0, 0], sizes = [1, 4, 128], strides = [1, 1, 1]} : vector<3x4x128xf32> to vector<1x4x128xf32>
    %168 = vector.shape_cast %167 : vector<1x4x128xf32> to vector<4x128xf32>
    %169 = vector.broadcast %164 : f32 to vector<4x128xf32>
    %170 = arith.mulf %169, %168 : vector<4x128xf32>
    %171 = arith.addf %163, %170 : vector<4x128xf32>
    %172 = vector.extract_strided_slice %74 {offsets = [1, 0, 0], sizes = [1, 4, 128], strides = [1, 1, 1]} : vector<3x4x128xf32> to vector<1x4x128xf32>
    %173 = vector.shape_cast %172 : vector<1x4x128xf32> to vector<4x128xf32>
    %174 = vector.broadcast %165 : f32 to vector<4x128xf32>
    %175 = arith.mulf %174, %173 : vector<4x128xf32>
    %176 = arith.addf %171, %175 : vector<4x128xf32>
    %177 = vector.extract_strided_slice %74 {offsets = [2, 0, 0], sizes = [1, 4, 128], strides = [1, 1, 1]} : vector<3x4x128xf32> to vector<1x4x128xf32>
    %178 = vector.shape_cast %177 : vector<1x4x128xf32> to vector<4x128xf32>
    %179 = vector.broadcast %166 : f32 to vector<4x128xf32>
    %180 = arith.mulf %179, %178 : vector<4x128xf32>
    %181 = arith.addf %176, %180 : vector<4x128xf32>
    %c4 = arith.constant 4 : index
    %182 = memref.load %arg6[%c4] : memref<21xf32, #tpu.memory_space<smem>>
    %c11 = arith.constant 11 : index
    %183 = memref.load %arg6[%c11] : memref<21xf32, #tpu.memory_space<smem>>
    %c18 = arith.constant 18 : index
    %184 = memref.load %arg6[%c18] : memref<21xf32, #tpu.memory_space<smem>>
    %c-1_i32 = arith.constant -1 : i32
    %185 = vector.broadcast %c-1_i32 : i32 to vector<1x128xi32>
    %186 = arith.cmpi sge, %75, %185 : vector<1x128xi32>
    %c127_i32 = arith.constant 127 : i32
    %187 = vector.broadcast %c127_i32 : i32 to vector<1x128xi32>
    %188 = arith.cmpi slt, %75, %187 : vector<1x128xi32>
    %189 = arith.andi %186, %188 : vector<1x128xi1>
    %190 = vector.shape_cast %189 : vector<1x128xi1> to vector<1x1x128xi1>
    %c127_i32_42 = arith.constant 127 : i32
    %191 = tpu.dynamic_rotate %74 by %c127_i32_42 dim 2 : vector<3x4x128xf32>, i32 -> vector<3x4x128xf32>
    %cst_43 = arith.constant 0.000000e+00 : f32
    %192 = vector.shape_cast %190 : vector<1x1x128xi1> to vector<1x1x128xi1>
    %193 = vector.broadcast %192 : vector<1x1x128xi1> to vector<3x4x128xi1>
    %194 = vector.broadcast %cst_43 : f32 to vector<3x4x128xf32>
    %195 = arith.select %193, %191, %194 : vector<3x4x128xi1>, vector<3x4x128xf32>
    %196 = vector.extract_strided_slice %195 {offsets = [0, 0, 0], sizes = [1, 4, 128], strides = [1, 1, 1]} : vector<3x4x128xf32> to vector<1x4x128xf32>
    %197 = vector.shape_cast %196 : vector<1x4x128xf32> to vector<4x128xf32>
    %198 = vector.broadcast %182 : f32 to vector<4x128xf32>
    %199 = arith.mulf %198, %197 : vector<4x128xf32>
    %200 = arith.addf %181, %199 : vector<4x128xf32>
    %201 = vector.extract_strided_slice %195 {offsets = [1, 0, 0], sizes = [1, 4, 128], strides = [1, 1, 1]} : vector<3x4x128xf32> to vector<1x4x128xf32>
    %202 = vector.shape_cast %201 : vector<1x4x128xf32> to vector<4x128xf32>
    %203 = vector.broadcast %183 : f32 to vector<4x128xf32>
    %204 = arith.mulf %203, %202 : vector<4x128xf32>
    %205 = arith.addf %200, %204 : vector<4x128xf32>
    %206 = vector.extract_strided_slice %195 {offsets = [2, 0, 0], sizes = [1, 4, 128], strides = [1, 1, 1]} : vector<3x4x128xf32> to vector<1x4x128xf32>
    %207 = vector.shape_cast %206 : vector<1x4x128xf32> to vector<4x128xf32>
    %208 = vector.broadcast %184 : f32 to vector<4x128xf32>
    %209 = arith.mulf %208, %207 : vector<4x128xf32>
    %210 = arith.addf %205, %209 : vector<4x128xf32>
    %c5 = arith.constant 5 : index
    %211 = memref.load %arg6[%c5] : memref<21xf32, #tpu.memory_space<smem>>
    %c12 = arith.constant 12 : index
    %212 = memref.load %arg6[%c12] : memref<21xf32, #tpu.memory_space<smem>>
    %c19 = arith.constant 19 : index
    %213 = memref.load %arg6[%c19] : memref<21xf32, #tpu.memory_space<smem>>
    %c-2_i32 = arith.constant -2 : i32
    %214 = vector.broadcast %c-2_i32 : i32 to vector<1x128xi32>
    %215 = arith.cmpi sge, %75, %214 : vector<1x128xi32>
    %c126_i32 = arith.constant 126 : i32
    %216 = vector.broadcast %c126_i32 : i32 to vector<1x128xi32>
    %217 = arith.cmpi slt, %75, %216 : vector<1x128xi32>
    %218 = arith.andi %215, %217 : vector<1x128xi1>
    %219 = vector.shape_cast %218 : vector<1x128xi1> to vector<1x1x128xi1>
    %c126_i32_44 = arith.constant 126 : i32
    %220 = tpu.dynamic_rotate %74 by %c126_i32_44 dim 2 : vector<3x4x128xf32>, i32 -> vector<3x4x128xf32>
    %cst_45 = arith.constant 0.000000e+00 : f32
    %221 = vector.shape_cast %219 : vector<1x1x128xi1> to vector<1x1x128xi1>
    %222 = vector.broadcast %221 : vector<1x1x128xi1> to vector<3x4x128xi1>
    %223 = vector.broadcast %cst_45 : f32 to vector<3x4x128xf32>
    %224 = arith.select %222, %220, %223 : vector<3x4x128xi1>, vector<3x4x128xf32>
    %225 = vector.extract_strided_slice %224 {offsets = [0, 0, 0], sizes = [1, 4, 128], strides = [1, 1, 1]} : vector<3x4x128xf32> to vector<1x4x128xf32>
    %226 = vector.shape_cast %225 : vector<1x4x128xf32> to vector<4x128xf32>
    %227 = vector.broadcast %211 : f32 to vector<4x128xf32>
    %228 = arith.mulf %227, %226 : vector<4x128xf32>
    %229 = arith.addf %210, %228 : vector<4x128xf32>
    %230 = vector.extract_strided_slice %224 {offsets = [1, 0, 0], sizes = [1, 4, 128], strides = [1, 1, 1]} : vector<3x4x128xf32> to vector<1x4x128xf32>
    %231 = vector.shape_cast %230 : vector<1x4x128xf32> to vector<4x128xf32>
    %232 = vector.broadcast %212 : f32 to vector<4x128xf32>
    %233 = arith.mulf %232, %231 : vector<4x128xf32>
    %234 = arith.addf %229, %233 : vector<4x128xf32>
    %235 = vector.extract_strided_slice %224 {offsets = [2, 0, 0], sizes = [1, 4, 128], strides = [1, 1, 1]} : vector<3x4x128xf32> to vector<1x4x128xf32>
    %236 = vector.shape_cast %235 : vector<1x4x128xf32> to vector<4x128xf32>
    %237 = vector.broadcast %213 : f32 to vector<4x128xf32>
    %238 = arith.mulf %237, %236 : vector<4x128xf32>
    %239 = arith.addf %234, %238 : vector<4x128xf32>
    %c6 = arith.constant 6 : index
    %240 = memref.load %arg6[%c6] : memref<21xf32, #tpu.memory_space<smem>>
    %c13 = arith.constant 13 : index
    %241 = memref.load %arg6[%c13] : memref<21xf32, #tpu.memory_space<smem>>
    %c20 = arith.constant 20 : index
    %242 = memref.load %arg6[%c20] : memref<21xf32, #tpu.memory_space<smem>>
    %c-3_i32 = arith.constant -3 : i32
    %243 = vector.broadcast %c-3_i32 : i32 to vector<1x128xi32>
    %244 = arith.cmpi sge, %75, %243 : vector<1x128xi32>
    %c125_i32 = arith.constant 125 : i32
    %245 = vector.broadcast %c125_i32 : i32 to vector<1x128xi32>
    %246 = arith.cmpi slt, %75, %245 : vector<1x128xi32>
    %247 = arith.andi %244, %246 : vector<1x128xi1>
    %248 = vector.shape_cast %247 : vector<1x128xi1> to vector<1x1x128xi1>
    %c125_i32_46 = arith.constant 125 : i32
    %249 = tpu.dynamic_rotate %74 by %c125_i32_46 dim 2 : vector<3x4x128xf32>, i32 -> vector<3x4x128xf32>
    %cst_47 = arith.constant 0.000000e+00 : f32
    %250 = vector.shape_cast %248 : vector<1x1x128xi1> to vector<1x1x128xi1>
    %251 = vector.broadcast %250 : vector<1x1x128xi1> to vector<3x4x128xi1>
    %252 = vector.broadcast %cst_47 : f32 to vector<3x4x128xf32>
    %253 = arith.select %251, %249, %252 : vector<3x4x128xi1>, vector<3x4x128xf32>
    %254 = vector.extract_strided_slice %253 {offsets = [0, 0, 0], sizes = [1, 4, 128], strides = [1, 1, 1]} : vector<3x4x128xf32> to vector<1x4x128xf32>
    %255 = vector.shape_cast %254 : vector<1x4x128xf32> to vector<4x128xf32>
    %256 = vector.broadcast %240 : f32 to vector<4x128xf32>
    %257 = arith.mulf %256, %255 : vector<4x128xf32>
    %258 = arith.addf %239, %257 : vector<4x128xf32>
    %259 = vector.extract_strided_slice %253 {offsets = [1, 0, 0], sizes = [1, 4, 128], strides = [1, 1, 1]} : vector<3x4x128xf32> to vector<1x4x128xf32>
    %260 = vector.shape_cast %259 : vector<1x4x128xf32> to vector<4x128xf32>
    %261 = vector.broadcast %241 : f32 to vector<4x128xf32>
    %262 = arith.mulf %261, %260 : vector<4x128xf32>
    %263 = arith.addf %258, %262 : vector<4x128xf32>
    %264 = vector.extract_strided_slice %253 {offsets = [2, 0, 0], sizes = [1, 4, 128], strides = [1, 1, 1]} : vector<3x4x128xf32> to vector<1x4x128xf32>
    %265 = vector.shape_cast %264 : vector<1x4x128xf32> to vector<4x128xf32>
    %266 = vector.broadcast %242 : f32 to vector<4x128xf32>
    %267 = arith.mulf %266, %265 : vector<4x128xf32>
    %268 = arith.addf %263, %267 : vector<4x128xf32>
    %269 = arith.negf %268 : vector<4x128xf32>
    %270 = math.exp %269 : vector<4x128xf32>
    %cst_48 = arith.constant 1.000000e+00 : f32
    %271 = vector.broadcast %cst_48 : f32 to vector<4x128xf32>
    %272 = arith.addf %271, %270 : vector<4x128xf32>
    %273 = arith.divf %271, %272 : vector<4x128xf32>
    %cst_49 = arith.constant 9.99999997E-7 : f32
    %cst_50 = arith.constant 3.40282347E+38 : f32
    %274 = vector.broadcast %cst_49 : f32 to vector<4x128xf32>
    %275 = arith.maximumf %274, %273 : vector<4x128xf32>
    %276 = vector.broadcast %cst_50 : f32 to vector<4x128xf32>
    %277 = arith.minimumf %276, %275 : vector<4x128xf32>
    %278 = vector.shape_cast %277 : vector<4x128xf32> to vector<4x1x128xf32>
    %279 = vector.broadcast %278 : vector<4x1x128xf32> to vector<4x32x128xf32>
    %280 = arith.mulf %279, %52 : vector<4x32x128xf32>
    %c0_51 = arith.constant 0 : index
    %c0_52 = arith.constant 0 : index
    %c0_53 = arith.constant 0 : index
    %281 = vector.load %arg7[%c0_51, %c0_52, %c0_53] : memref<4x32x128xf32, #tpu.memory_space<vmem>>, vector<4x32x128xf32>
    tpu.vector_store %arg7[%c0_51, %c0_52, %c0_53], %280 {strides = array<i32>} : memref<4x32x128xf32, #tpu.memory_space<vmem>>, vector<4x32x128xf32>,
    return
  }
  func.func @transform_0(%arg0: i32) -> (i32, i32, i32) {
    %c0_i32 = arith.constant 0 : i32
    %c0_i32_0 = arith.constant 0 : i32
    %c0_i32_1 = arith.constant 0 : i32
    return %arg0, %c0_i32, %c0_i32_0 : i32, i32, i32
  }
  func.func @transform_1(%arg0: i32) -> (i32, i32, i32) {
    %c0_i32 = arith.constant 0 : i32
    %c0_i32_0 = arith.constant 0 : i32
    %c0_i32_1 = arith.constant 0 : i32
    %c0_i32_2 = arith.constant 0 : i32
    return %c0_i32, %c0_i32_0, %c0_i32_1 : i32, i32, i32
  }
  func.func @transform_2(%arg0: i32) -> (i32, i32) {
    %c0_i32 = arith.constant 0 : i32
    %c0_i32_0 = arith.constant 0 : i32
    %c0_i32_1 = arith.constant 0 : i32
    return %c0_i32, %c0_i32_0 : i32, i32
  }
  func.func @transform_3(%arg0: i32) -> (i32, i32) {
    %c0_i32 = arith.constant 0 : i32
    %c0_i32_0 = arith.constant 0 : i32
    %c0_i32_1 = arith.constant 0 : i32
    return %c0_i32, %c0_i32_0 : i32, i32
  }
  func.func @transform_4(%arg0: i32) -> (i32, i32) {
    %c0_i32 = arith.constant 0 : i32
    %c0_i32_0 = arith.constant 0 : i32
    %c0_i32_1 = arith.constant 0 : i32
    return %c0_i32, %c0_i32_0 : i32, i32
  }
  func.func @transform_5(%arg0: i32) -> i32 {
    %c0_i32 = arith.constant 0 : i32
    %c0_i32_0 = arith.constant 0 : i32
    return %c0_i32 : i32
  }
  func.func @transform_6(%arg0: i32) -> (i32, i32, i32) {
    %c0_i32 = arith.constant 0 : i32
    %c0_i32_0 = arith.constant 0 : i32
    %c0_i32_1 = arith.constant 0 : i32
    return %arg0, %c0_i32, %c0_i32_0 : i32, i32, i32
  }
}

</mosaic_0001>

<llo_original>
// kernel: tpu_custom_call.1
$region0: #{tpu_custom_call.1}
  #allocation0 [shape = 'u32[]', space=smem, size = 0x4, offset = 0x4, fixed_abs, tag = 'smem constant byte address 0x4 - core index']
  #allocation1 [shape = 'u32[144,128]{1,0:T(1,128)}', space=vmem, size = 0x12000, scoped, tag = 'internal scratch']
  %s0 = inlined_call_operand.hbm [shape: f32[4,32,128], index: 0, kind: input, shape index: {}]
  %s1 = inlined_call_operand.vmem [shape: f32[3,32,2], index: 1, kind: input, shape index: {}]
  %s2 = inlined_call_operand.vmem [shape: f32[1,2], index: 2, kind: input, shape index: {}]
  %s3 = inlined_call_operand.vmem [shape: f32[2,32], index: 3, kind: input, shape index: {}]
  %s4 = inlined_call_operand.vmem [shape: f32[1,32], index: 4, kind: input, shape index: {}]
  %s5 = inlined_call_operand.vmem [shape: f32[21], index: 5, kind: input, shape index: {}]
  %s6 = inlined_call_operand.hbm [shape: f32[4,32,128], index: 6, kind: output, shape index: {}]
  %s7 = sld [smem:[#allocation0]]
  $region42: #{tpu_custom_call.1} parent=0
    _
  %s9 = ssub.s32 1, %s7
  %s10 = scalar_select 0, %s9, %s7
  $region1: #{tpu_custom_call.1} parent=0
    #allocation2 [shape = 'u8[65536]{0}', space=vmem, size = 0x10000, scoped, tag = 'input window, operand 0, single buffered']
    #allocation3 [shape = 's32[1]{0}', space=sflag, size = 0x4, scoped, tag = 'scoped memory for tpu_custom_call.1']
    #allocation4 [shape = 's32[1]{0}', space=sflag, size = 0x4, scoped, tag = 'scoped memory for tpu_custom_call.1']
    #allocation5 [shape = 's32[1]{0}', space=sflag, size = 0x4, scoped, tag = 'scoped memory for tpu_custom_call.1']
    #allocation6 [shape = 'u8[512]{0}', space=smem, size = 0x200, scoped, tag = 'input window, operand 5, single buffered']
    #allocation7 [shape = 'u8[65536]{0}', space=vmem, size = 0x10000, scoped, tag = 'output window, operand 0, single buffered']
    %11 = vsyncpa [#allocation3], 0
    %12 = vsyncpa [#allocation5], 0
    %13 = vsyncpa [#allocation4], 0
    // Predicated region
    $region2: #{tpu_custom_call.1} parent=1 // pred_check
      _
    $region3: #{tpu_custom_call.1} parent=1 // pred_check_branch
      %15 = sbr.rel (0) target = $region5
    $region4: #{tpu_custom_call.1} parent=1 // pred_region
      %s17 = ssub.s32 2048, 2048
      %18 = vsyncadd [#allocation3], %s17
      %s19 = sshll.u32 [#allocation2], 4
      %s20 = int_to_ptr.vmem [resolvable:$true] %s19
      %25 = dma.hbm_to_vmem [thread:$0]  %s0, 2048, %s20, [#allocation3], 128, 128, 8
    $region5: #{tpu_custom_call.1} parent=1 // pred_fallthru
      _
    // Predicated region
    $region6: #{tpu_custom_call.1} parent=1 // pred_check
      _
    $region7: #{tpu_custom_call.1} parent=1 // pred_check_branch
      %27 = sbr.rel (0) target = $region9
    $region8: #{tpu_custom_call.1} parent=1 // pred_region
      _
    $region9: #{tpu_custom_call.1} parent=1 // pred_fallthru
      _
    // Predicated region
    $region10: #{tpu_custom_call.1} parent=1 // pred_check
      _
    $region11: #{tpu_custom_call.1} parent=1 // pred_check_branch
      %29 = sbr.rel (0) target = $region13
    $region12: #{tpu_custom_call.1} parent=1 // pred_region
      _
    $region13: #{tpu_custom_call.1} parent=1 // pred_fallthru
      _
    // Predicated region
    $region14: #{tpu_custom_call.1} parent=1 // pred_check
      _
    $region15: #{tpu_custom_call.1} parent=1 // pred_check_branch
      %31 = sbr.rel (0) target = $region17
    $region16: #{tpu_custom_call.1} parent=1 // pred_region
      _
    $region17: #{tpu_custom_call.1} parent=1 // pred_fallthru
      _
    // Predicated region
    $region18: #{tpu_custom_call.1} parent=1 // pred_check
      _
    $region19: #{tpu_custom_call.1} parent=1 // pred_check_branch
      %33 = sbr.rel (0) target = $region21
    $region20: #{tpu_custom_call.1} parent=1 // pred_region
      _
    $region21: #{tpu_custom_call.1} parent=1 // pred_fallthru
      _
    // Predicated region
    $region22: #{tpu_custom_call.1} parent=1 // pred_check
      _
    $region23: #{tpu_custom_call.1} parent=1 // pred_check_branch
      %35 = sbr.rel (0) target = $region25
    $region24: #{tpu_custom_call.1} parent=1 // pred_region
      %s37 = ssub.s32 16, 16
      %38 = vsyncadd [#allocation5], %s37
      %s40 = sshll.u32 %s5, 4
      %s41 = int_to_ptr.vmem [resolvable:$true] %s40
      %43 = dma.vmem_to_smem %s41, 16, [#allocation6], [#allocation5]
    $region25: #{tpu_custom_call.1} parent=1 // pred_fallthru
      _
    // Predicated region
    $region26: #{tpu_custom_call.1} parent=1 // pred_check
      _
    $region27: #{tpu_custom_call.1} parent=1 // pred_check_branch
      %45 = sbr.rel (0) target = $region29
    $region28: #{tpu_custom_call.1} parent=1 // pred_region
      %46 = dma.done [#allocation3], 2048
    $region29: #{tpu_custom_call.1} parent=1 // pred_fallthru
      _
    // Predicated region
    $region30: #{tpu_custom_call.1} parent=1 // pred_check
      _
    $region31: #{tpu_custom_call.1} parent=1 // pred_check_branch
      %48 = sbr.rel (0) target = $region33
    $region32: #{tpu_custom_call.1} parent=1 // pred_region
      %49 = dma.done [#allocation5], 16
    $region33: #{tpu_custom_call.1} parent=1 // pred_fallthru
      _
    %50 = sfence
    %v51 = vld [vmem:[#allocation2] sm:$0xff]
    %v52 = vld [vmem:[#allocation2 + $0x8] sm:$0xff]
    %v53 = vld [vmem:[#allocation2 + $0x10] sm:$0xff]
    %v54 = vld [vmem:[#allocation2 + $0x18] sm:$0xff]
    %v55 = vld [vmem:[#allocation2 + $0x20] sm:$0xff]
    %v56 = vld [vmem:[#allocation2 + $0x28] sm:$0xff]
    %v57 = vld [vmem:[#allocation2 + $0x30] sm:$0xff]
    %v58 = vld [vmem:[#allocation2 + $0x38] sm:$0xff]
    %v59 = vld [vmem:[#allocation2 + $0x40] sm:$0xff]
    %v60 = vld [vmem:[#allocation2 + $0x48] sm:$0xff]
    %v61 = vld [vmem:[#allocation2 + $0x50] sm:$0xff]
    %v62 = vld [vmem:[#allocation2 + $0x58] sm:$0xff]
    %v63 = vld [vmem:[#allocation2 + $0x60] sm:$0xff]
    %v64 = vld [vmem:[#allocation2 + $0x68] sm:$0xff]
    %v65 = vld [vmem:[#allocation2 + $0x70] sm:$0xff]
    %v66 = vld [vmem:[#allocation2 + $0x78] sm:$0xff]
    %67 = vadd.xlane.f32.xlu0 %v51
    %v68 = vpop.xlane.xlu0 %67
    %69 = vadd.xlane.f32.xlu0 %v52
    %v70 = vpop.xlane.xlu0 %69
    %71 = vadd.xlane.f32.xlu0 %v53
    %v72 = vpop.xlane.xlu0 %71
    %73 = vadd.xlane.f32.xlu0 %v54
    %v74 = vpop.xlane.xlu0 %73
    %75 = vadd.xlane.f32.xlu0 %v55
    %v76 = vpop.xlane.xlu0 %75
    %77 = vadd.xlane.f32.xlu0 %v56
    %v78 = vpop.xlane.xlu0 %77
    %79 = vadd.xlane.f32.xlu0 %v57
    %v80 = vpop.xlane.xlu0 %79
    %81 = vadd.xlane.f32.xlu0 %v58
    %v82 = vpop.xlane.xlu0 %81
    %83 = vadd.xlane.f32.xlu0 %v59
    %v84 = vpop.xlane.xlu0 %83
    %85 = vadd.xlane.f32.xlu0 %v60
    %v86 = vpop.xlane.xlu0 %85
    %87 = vadd.xlane.f32.xlu0 %v61
    %v88 = vpop.xlane.xlu0 %87
    %89 = vadd.xlane.f32.xlu0 %v62
    %v90 = vpop.xlane.xlu0 %89
    %91 = vadd.xlane.f32.xlu0 %v63
    %v92 = vpop.xlane.xlu0 %91
    %93 = vadd.xlane.f32.xlu0 %v64
    %v94 = vpop.xlane.xlu0 %93
    %95 = vadd.xlane.f32.xlu0 %v65
    %v96 = vpop.xlane.xlu0 %95
    %97 = vadd.xlane.f32.xlu0 %v66
    %v98 = vpop.xlane.xlu0 %97
    %v99 = vrcp.pop 128.0
    %v100 = vmul.f32 %v68, %v99
    %v101 = vmul.f32 %v70, %v99
    %v102 = vmul.f32 %v72, %v99
    %v103 = vmul.f32 %v74, %v99
    %v104 = vmul.f32 %v76, %v99
    %v105 = vmul.f32 %v78, %v99
    %v106 = vmul.f32 %v80, %v99
    %v107 = vmul.f32 %v82, %v99
    %v108 = vmul.f32 %v84, %v99
    %v109 = vmul.f32 %v86, %v99
    %v110 = vmul.f32 %v88, %v99
    %v111 = vmul.f32 %v90, %v99
    %v112 = vmul.f32 %v92, %v99
    %v113 = vmul.f32 %v94, %v99
    %v114 = vmul.f32 %v96, %v99
    %v115 = vmul.f32 %v98, %v99
    %116 = vmax.xlane.f32.xlu0 %v51
    %v117 = vpop.xlane.xlu0 %116
    %118 = vmax.xlane.f32.xlu0 %v52
    %v119 = vpop.xlane.xlu0 %118
    %120 = vmax.xlane.f32.xlu0 %v53
    %v121 = vpop.xlane.xlu0 %120
    %122 = vmax.xlane.f32.xlu0 %v54
    %v123 = vpop.xlane.xlu0 %122
    %124 = vmax.xlane.f32.xlu0 %v55
    %v125 = vpop.xlane.xlu0 %124
    %126 = vmax.xlane.f32.xlu0 %v56
    %v127 = vpop.xlane.xlu0 %126
    %128 = vmax.xlane.f32.xlu0 %v57
    %v129 = vpop.xlane.xlu0 %128
    %130 = vmax.xlane.f32.xlu0 %v58
    %v131 = vpop.xlane.xlu0 %130
    %132 = vmax.xlane.f32.xlu0 %v59
    %v133 = vpop.xlane.xlu0 %132
    %134 = vmax.xlane.f32.xlu0 %v60
    %v135 = vpop.xlane.xlu0 %134
    %136 = vmax.xlane.f32.xlu0 %v61
    %v137 = vpop.xlane.xlu0 %136
    %138 = vmax.xlane.f32.xlu0 %v62
    %v139 = vpop.xlane.xlu0 %138
    %140 = vmax.xlane.f32.xlu0 %v63
    %v141 = vpop.xlane.xlu0 %140
    %142 = vmax.xlane.f32.xlu0 %v64
    %v143 = vpop.xlane.xlu0 %142
    %144 = vmax.xlane.f32.xlu0 %v65
    %v145 = vpop.xlane.xlu0 %144
    %146 = vmax.xlane.f32.xlu0 %v66
    %v147 = vpop.xlane.xlu0 %146
    %v148 = vsub.f32 %v51, %v100
    %v149 = vsub.f32 %v52, %v101
    %v150 = vsub.f32 %v53, %v102
    %v151 = vsub.f32 %v54, %v103
    %v152 = vsub.f32 %v55, %v104
    %v153 = vsub.f32 %v56, %v105
    %v154 = vsub.f32 %v57, %v106
    %v155 = vsub.f32 %v58, %v107
    %v156 = vsub.f32 %v59, %v108
    %v157 = vsub.f32 %v60, %v109
    %v158 = vsub.f32 %v61, %v110
    %v159 = vsub.f32 %v62, %v111
    %v160 = vsub.f32 %v63, %v112
    %v161 = vsub.f32 %v64, %v113
    %v162 = vsub.f32 %v65, %v114
    %v163 = vsub.f32 %v66, %v115
    %v164 = vmul.f32 %v148, %v148
    %v165 = vmul.f32 %v149, %v149
    %v166 = vmul.f32 %v150, %v150
    %v167 = vmul.f32 %v151, %v151
    %v168 = vmul.f32 %v152, %v152
    %v169 = vmul.f32 %v153, %v153
    %v170 = vmul.f32 %v154, %v154
    %v171 = vmul.f32 %v155, %v155
    %v172 = vmul.f32 %v156, %v156
    %v173 = vmul.f32 %v157, %v157
    %v174 = vmul.f32 %v158, %v158
    %v175 = vmul.f32 %v159, %v159
    %v176 = vmul.f32 %v160, %v160
    %v177 = vmul.f32 %v161, %v161
    %v178 = vmul.f32 %v162, %v162
    %v179 = vmul.f32 %v163, %v163
    %180 = vadd.xlane.f32.xlu0 %v164
    %v181 = vpop.xlane.xlu0 %180
    %182 = vadd.xlane.f32.xlu0 %v165
    %v183 = vpop.xlane.xlu0 %182
    %184 = vadd.xlane.f32.xlu0 %v166
    %v185 = vpop.xlane.xlu0 %184
    %186 = vadd.xlane.f32.xlu0 %v167
    %v187 = vpop.xlane.xlu0 %186
    %188 = vadd.xlane.f32.xlu0 %v168
    %v189 = vpop.xlane.xlu0 %188
    %190 = vadd.xlane.f32.xlu0 %v169
    %v191 = vpop.xlane.xlu0 %190
    %192 = vadd.xlane.f32.xlu0 %v170
    %v193 = vpop.xlane.xlu0 %192
    %194 = vadd.xlane.f32.xlu0 %v171
    %v195 = vpop.xlane.xlu0 %194
    %196 = vadd.xlane.f32.xlu0 %v172
    %v197 = vpop.xlane.xlu0 %196
    %198 = vadd.xlane.f32.xlu0 %v173
    %v199 = vpop.xlane.xlu0 %198
    %200 = vadd.xlane.f32.xlu0 %v174
    %v201 = vpop.xlane.xlu0 %200
    %202 = vadd.xlane.f32.xlu0 %v175
    %v203 = vpop.xlane.xlu0 %202
    %204 = vadd.xlane.f32.xlu0 %v176
    %v205 = vpop.xlane.xlu0 %204
    %206 = vadd.xlane.f32.xlu0 %v177
    %v207 = vpop.xlane.xlu0 %206
    %208 = vadd.xlane.f32.xlu0 %v178
    %v209 = vpop.xlane.xlu0 %208
    %210 = vadd.xlane.f32.xlu0 %v179
    %v211 = vpop.xlane.xlu0 %210
    %v212 = vrcp.pop 127.0
    %v213 = vmul.f32 %v181, %v212
    %v214 = vmul.f32 %v183, %v212
    %v215 = vmul.f32 %v185, %v212
    %v216 = vmul.f32 %v187, %v212
    %v217 = vmul.f32 %v189, %v212
    %v218 = vmul.f32 %v191, %v212
    %v219 = vmul.f32 %v193, %v212
    %v220 = vmul.f32 %v195, %v212
    %v221 = vmul.f32 %v197, %v212
    %v222 = vmul.f32 %v199, %v212
    %v223 = vmul.f32 %v201, %v212
    %v224 = vmul.f32 %v203, %v212
    %v225 = vmul.f32 %v205, %v212
    %v226 = vmul.f32 %v207, %v212
    %v227 = vmul.f32 %v209, %v212
    %v228 = vmul.f32 %v211, %v212
    %v229 = vmax.f32 %v213, 0.0
    %v230 = vmax.f32 %v214, 0.0
    %v231 = vmax.f32 %v215, 0.0
    %v232 = vmax.f32 %v216, 0.0
    %v233 = vmax.f32 %v217, 0.0
    %v234 = vmax.f32 %v218, 0.0
    %v235 = vmax.f32 %v219, 0.0
    %v236 = vmax.f32 %v220, 0.0
    %v237 = vmax.f32 %v221, 0.0
    %v238 = vmax.f32 %v222, 0.0
    %v239 = vmax.f32 %v223, 0.0
    %v240 = vmax.f32 %v224, 0.0
    %v241 = vmax.f32 %v225, 0.0
    %v242 = vmax.f32 %v226, 0.0
    %v243 = vmax.f32 %v227, 0.0
    %v244 = vmax.f32 %v228, 0.0
    %v245 = vrsqrt.pop %v229
    %v246 = vmul.f32 %v229, %v245
    %vm247 = vcmp.eq.f32.partialorder %v229, inf
    %v248 = vsel %vm247, %v229, %v246
    %vm249 = vcmp.eq.f32.partialorder %v229, 0.0
    %v250 = vand.u32 %v229, 2147483648
    %v251 = vsel %vm249, %v250, %v248
    %v252 = vrsqrt.pop %v230
    %v253 = vmul.f32 %v230, %v252
    %vm254 = vcmp.eq.f32.partialorder %v230, inf
    %v255 = vsel %vm254, %v230, %v253
    %vm256 = vcmp.eq.f32.partialorder %v230, 0.0
    %v257 = vand.u32 %v230, 2147483648
    %v258 = vsel %vm256, %v257, %v255
    %v259 = vrsqrt.pop %v231
    %v260 = vmul.f32 %v231, %v259
    %vm261 = vcmp.eq.f32.partialorder %v231, inf
    %v262 = vsel %vm261, %v231, %v260
    %vm263 = vcmp.eq.f32.partialorder %v231, 0.0
    %v264 = vand.u32 %v231, 2147483648
    %v265 = vsel %vm263, %v264, %v262
    %v266 = vrsqrt.pop %v232
    %v267 = vmul.f32 %v232, %v266
    %vm268 = vcmp.eq.f32.partialorder %v232, inf
    %v269 = vsel %vm268, %v232, %v267
    %vm270 = vcmp.eq.f32.partialorder %v232, 0.0
    %v271 = vand.u32 %v232, 2147483648
    %v272 = vsel %vm270, %v271, %v269
    %v273 = vrsqrt.pop %v233
    %v274 = vmul.f32 %v233, %v273
    %vm275 = vcmp.eq.f32.partialorder %v233, inf
    %v276 = vsel %vm275, %v233, %v274
    %vm277 = vcmp.eq.f32.partialorder %v233, 0.0
    %v278 = vand.u32 %v233, 2147483648
    %v279 = vsel %vm277, %v278, %v276
    %v280 = vrsqrt.pop %v234
    %v281 = vmul.f32 %v234, %v280
    %vm282 = vcmp.eq.f32.partialorder %v234, inf
    %v283 = vsel %vm282, %v234, %v281
    %vm284 = vcmp.eq.f32.partialorder %v234, 0.0
    %v285 = vand.u32 %v234, 2147483648
    %v286 = vsel %vm284, %v285, %v283
    %v287 = vrsqrt.pop %v235
    %v288 = vmul.f32 %v235, %v287
    %vm289 = vcmp.eq.f32.partialorder %v235, inf
    %v290 = vsel %vm289, %v235, %v288
    %vm291 = vcmp.eq.f32.partialorder %v235, 0.0
    %v292 = vand.u32 %v235, 2147483648
    %v293 = vsel %vm291, %v292, %v290
    %v294 = vrsqrt.pop %v236
    %v295 = vmul.f32 %v236, %v294
    %vm296 = vcmp.eq.f32.partialorder %v236, inf
    %v297 = vsel %vm296, %v236, %v295
    %vm298 = vcmp.eq.f32.partialorder %v236, 0.0
    %v299 = vand.u32 %v236, 2147483648
    %v300 = vsel %vm298, %v299, %v297
    %v301 = vrsqrt.pop %v237
    %v302 = vmul.f32 %v237, %v301
    %vm303 = vcmp.eq.f32.partialorder %v237, inf
    %v304 = vsel %vm303, %v237, %v302
    %vm305 = vcmp.eq.f32.partialorder %v237, 0.0
    %v306 = vand.u32 %v237, 2147483648
    %v307 = vsel %vm305, %v306, %v304
    %v308 = vrsqrt.pop %v238
    %v309 = vmul.f32 %v238, %v308
    %vm310 = vcmp.eq.f32.partialorder %v238, inf
    %v311 = vsel %vm310, %v238, %v309
    %vm312 = vcmp.eq.f32.partialorder %v238, 0.0
    %v313 = vand.u32 %v238, 2147483648
    %v314 = vsel %vm312, %v313, %v311
    %v315 = vrsqrt.pop %v239
    %v316 = vmul.f32 %v239, %v315
    %vm317 = vcmp.eq.f32.partialorder %v239, inf
    %v318 = vsel %vm317, %v239, %v316
    %vm319 = vcmp.eq.f32.partialorder %v239, 0.0
    %v320 = vand.u32 %v239, 2147483648
    %v321 = vsel %vm319, %v320, %v318
    %v322 = vrsqrt.pop %v240
    %v323 = vmul.f32 %v240, %v322
    %vm324 = vcmp.eq.f32.partialorder %v240, inf
    %v325 = vsel %vm324, %v240, %v323
    %vm326 = vcmp.eq.f32.partialorder %v240, 0.0
    %v327 = vand.u32 %v240, 2147483648
    %v328 = vsel %vm326, %v327, %v325
    %v329 = vrsqrt.pop %v241
    %v330 = vmul.f32 %v241, %v329
    %vm331 = vcmp.eq.f32.partialorder %v241, inf
    %v332 = vsel %vm331, %v241, %v330
    %vm333 = vcmp.eq.f32.partialorder %v241, 0.0
    %v334 = vand.u32 %v241, 2147483648
    %v335 = vsel %vm333, %v334, %v332
    %v336 = vrsqrt.pop %v242
    %v337 = vmul.f32 %v242, %v336
    %vm338 = vcmp.eq.f32.partialorder %v242, inf
    %v339 = vsel %vm338, %v242, %v337
    %vm340 = vcmp.eq.f32.partialorder %v242, 0.0
    %v341 = vand.u32 %v242, 2147483648
    %v342 = vsel %vm340, %v341, %v339
    %v343 = vrsqrt.pop %v243
    %v344 = vmul.f32 %v243, %v343
    %vm345 = vcmp.eq.f32.partialorder %v243, inf
    %v346 = vsel %vm345, %v243, %v344
    %vm347 = vcmp.eq.f32.partialorder %v243, 0.0
    %v348 = vand.u32 %v243, 2147483648
    %v349 = vsel %vm347, %v348, %v346
    %v350 = vrsqrt.pop %v244
    %v351 = vmul.f32 %v244, %v350
    %vm352 = vcmp.eq.f32.partialorder %v244, inf
    %v353 = vsel %vm352, %v244, %v351
    %vm354 = vcmp.eq.f32.partialorder %v244, 0.0
    %v355 = vand.u32 %v244, 2147483648
    %v356 = vsel %vm354, %v355, %v353
    %v357 = vmax.f32 %v251, 1e-10
    %v358 = vmax.f32 %v258, 1e-10
    %v359 = vmax.f32 %v265, 1e-10
    %v360 = vmax.f32 %v272, 1e-10
    %v361 = vmax.f32 %v279, 1e-10
    %v362 = vmax.f32 %v286, 1e-10
    %v363 = vmax.f32 %v293, 1e-10
    %v364 = vmax.f32 %v300, 1e-10
    %v365 = vmax.f32 %v307, 1e-10
    %v366 = vmax.f32 %v314, 1e-10
    %v367 = vmax.f32 %v321, 1e-10
    %v368 = vmax.f32 %v328, 1e-10
    %v369 = vmax.f32 %v335, 1e-10
    %v370 = vmax.f32 %v342, 1e-10
    %v371 = vmax.f32 %v349, 1e-10
    %v372 = vmax.f32 %v356, 1e-10
    %v373 = vmin.f32 %v357, 3.4028235e+38
    %v374 = vmin.f32 %v358, 3.4028235e+38
    %v375 = vmin.f32 %v359, 3.4028235e+38
    %v376 = vmin.f32 %v360, 3.4028235e+38
    %v377 = vmin.f32 %v361, 3.4028235e+38
    %v378 = vmin.f32 %v362, 3.4028235e+38
    %v379 = vmin.f32 %v363, 3.4028235e+38
    %v380 = vmin.f32 %v364, 3.4028235e+38
    %v381 = vmin.f32 %v365, 3.4028235e+38
    %v382 = vmin.f32 %v366, 3.4028235e+38
    %v383 = vmin.f32 %v367, 3.4028235e+38
    %v384 = vmin.f32 %v368, 3.4028235e+38
    %v385 = vmin.f32 %v369, 3.4028235e+38
    %v386 = vmin.f32 %v370, 3.4028235e+38
    %v387 = vmin.f32 %v371, 3.4028235e+38
    %v388 = vmin.f32 %v372, 3.4028235e+38
    %v389 = vld [vmem:[%s1] sm:$0xff]
    %v390 = vld [vmem:[%s1 + $0x8] sm:$0xff]
    %v391 = vld [vmem:[%s1 + $0x10] sm:$0xff]
    %v392 = vld [vmem:[%s1 + $0x18] sm:$0xff]
    %v393 = vld [vmem:[%s1 + $0x20] sm:$0xff]
    %v394 = vld [vmem:[%s1 + $0x28] sm:$0xff]
    %v395 = vld [vmem:[%s1 + $0x30] sm:$0xff]
    %v396 = vld [vmem:[%s1 + $0x38] sm:$0xff]
    %v397 = vld [vmem:[%s1 + $0x40] sm:$0xff]
    %v398 = vld [vmem:[%s1 + $0x48] sm:$0xff]
    %v399 = vld [vmem:[%s1 + $0x50] sm:$0xff]
    %v400 = vld [vmem:[%s1 + $0x58] sm:$0xff]
    %v417 = vlaneseq
    %v418 = vand.u32 %v417, 127
    %v419 = vlaneseq
    %v420 = vshrl.u32 %v419, 7
    %v421 = vsub.s32 %v418, %v420
    %v422 = vrot.slane %v373, %v421
    %v423 = vadd.s32 %v418, 4294967288
    %v424 = vlaneseq
    %v425 = vshrl.u32 %v424, 7
    %v426 = vsub.s32 %v423, %v425
    %v427 = vrot.slane %v374, %v426
    %vm428 = vcmask 130112
    %v429 = vsel %vm428, %v427, %v422
    %v430 = vadd.s32 %v418, 4294967280
    %v431 = vlaneseq
    %v432 = vshrl.u32 %v431, 7
    %v433 = vsub.s32 %v430, %v432
    %v434 = vrot.slane %v375, %v433
    %vm435 = vcmask 195712
    %v436 = vsel %vm435, %v434, %v429
    %v437 = vadd.s32 %v418, 4294967272
    %v438 = vlaneseq
    %v439 = vshrl.u32 %v438, 7
    %v440 = vsub.s32 %v437, %v439
    %v441 = vrot.slane %v376, %v440
    %vm442 = vcmask 261312
    %v443 = vsel %vm442, %v441, %v436
    %v444 = vlaneseq
    %v445 = vshrl.u32 %v444, 7
    %v446 = vsub.s32 %v418, %v445
    %v447 = vrot.slane %v377, %v446
    %v448 = vlaneseq
    %v449 = vshrl.u32 %v448, 7
    %v450 = vsub.s32 %v423, %v449
    %v451 = vrot.slane %v378, %v450
    %v452 = vsel %vm428, %v451, %v447
    %v453 = vlaneseq
    %v454 = vshrl.u32 %v453, 7
    %v455 = vsub.s32 %v430, %v454
    %v456 = vrot.slane %v379, %v455
    %v457 = vsel %vm435, %v456, %v452
    %v458 = vlaneseq
    %v459 = vshrl.u32 %v458, 7
    %v460 = vsub.s32 %v437, %v459
    %v461 = vrot.slane %v380, %v460
    %v462 = vsel %vm442, %v461, %v457
    %v463 = vlaneseq
    %v464 = vshrl.u32 %v463, 7
    %v465 = vsub.s32 %v418, %v464
    %v466 = vrot.slane %v381, %v465
    %v467 = vlaneseq
    %v468 = vshrl.u32 %v467, 7
    %v469 = vsub.s32 %v423, %v468
    %v470 = vrot.slane %v382, %v469
    %v471 = vsel %vm428, %v470, %v466
    %v472 = vlaneseq
    %v473 = vshrl.u32 %v472, 7
    %v474 = vsub.s32 %v430, %v473
    %v475 = vrot.slane %v383, %v474
    %v476 = vsel %vm435, %v475, %v471
    %v477 = vlaneseq
    %v478 = vshrl.u32 %v477, 7
    %v479 = vsub.s32 %v437, %v478
    %v480 = vrot.slane %v384, %v479
    %v481 = vsel %vm442, %v480, %v476
    %v482 = vlaneseq
    %v483 = vshrl.u32 %v482, 7
    %v484 = vsub.s32 %v418, %v483
    %v485 = vrot.slane %v385, %v484
    %v486 = vlaneseq
    %v487 = vshrl.u32 %v486, 7
    %v488 = vsub.s32 %v423, %v487
    %v489 = vrot.slane %v386, %v488
    %v490 = vsel %vm428, %v489, %v485
    %v491 = vlaneseq
    %v492 = vshrl.u32 %v491, 7
    %v493 = vsub.s32 %v430, %v492
    %v494 = vrot.slane %v387, %v493
    %v495 = vsel %vm435, %v494, %v490
    %v496 = vlaneseq
    %v497 = vshrl.u32 %v496, 7
    %v498 = vsub.s32 %v437, %v497
    %v499 = vrot.slane %v388, %v498
    %v500 = vsel %vm442, %v499, %v495
    %vm501 = vcmask 1041409
    %v502 = vsel %vm501, %v462, %v443
    %vm503 = vcmask 1042434
    %v504 = vsel %vm503, %v481, %v502
    %vm505 = vcmask 1043459
    %v506 = vsel %vm505, %v500, %v504
    %vm507 = vcmask 261120
    %v508 = vsel %vm507, %v506, 0
    %510 = vmatprep.subr.mxu0 0.0
    %511 = vmatpush1.msra.mxu0 %v393
    %512 = vmatprep.subr.mxu0 0.0
    %513 = vmatpush1.msra.mxu0 %v394
    %514 = vmatprep.subr.mxu0 0.0
    %515 = vmatpush1.msra.mxu0 %v395
    %516 = vmatprep.subr.mxu0 0.0
    %517 = vmatpush1.msra.mxu0 %v396
    %518 = vmatprep.subr.mxu0 0.0
    %519 = vmatpush1.msra.mxu0 0.0
    %520 = vmatprep.subr.mxu0 0.0
    %521 = vmatpush1.msra.mxu0 0.0
    %522 = vmatprep.subr.mxu0 0.0
    %523 = vmatpush1.msra.mxu0 0.0
    %524 = vmatprep.subr.mxu0 0.0
    %525 = vmatpush1.msra.mxu0 0.0
    %526 = vmatprep.subr.mxu0 0.0
    %527 = vmatpush1.msra.mxu0 0.0
    %528 = vmatprep.subr.mxu0 0.0
    %529 = vmatpush1.msra.mxu0 0.0
    %530 = vmatprep.subr.mxu0 0.0
    %531 = vmatpush1.msra.mxu0 0.0
    %532 = vmatprep.subr.mxu0 0.0
    %533 = vmatpush1.msra.mxu0 0.0
    %534 = vmatprep.subr.mxu0 0.0
    %535 = vmatpush1.msra.mxu0 0.0
    %536 = vmatprep.subr.mxu0 0.0
    %537 = vmatpush1.msra.mxu0 0.0
    %538 = vmatprep.subr.mxu0 0.0
    %539 = vmatpush1.msra.mxu0 0.0
    %540 = vmatprep.subr.mxu0 0.0
    %541 = vmatpush1.msra.mxu0 0.0
    %542 = vmatprep.subr.mxu0 0.0
    %543 = vmatpush1.msra.mxu0 0.0
    %544 = vmatprep.subr.mxu0 0.0
    %545 = vmatpush1.msra.mxu0 0.0
    %546 = vmatprep.subr.mxu0 0.0
    %547 = vmatpush1.msra.mxu0 0.0
    %548 = vmatprep.subr.mxu0 0.0
    %549 = vmatpush1.msra.mxu0 0.0
    %550 = vmatprep.subr.mxu0 0.0
    %551 = vmatpush1.msra.mxu0 0.0
    %552 = vmatprep.subr.mxu0 0.0
    %553 = vmatpush1.msra.mxu0 0.0
    %554 = vmatprep.subr.mxu0 0.0
    %555 = vmatpush1.msra.mxu0 0.0
    %556 = vmatprep.subr.mxu0 0.0
    %557 = vmatpush1.msra.mxu0 0.0
    %558 = vmatprep.subr.mxu0 0.0
    %559 = vmatpush1.msra.mxu0 0.0
    %560 = vmatprep.subr.mxu0 0.0
    %561 = vmatpush1.msra.mxu0 0.0
    %562 = vmatprep.subr.mxu0 0.0
    %563 = vmatpush1.msra.mxu0 0.0
    %564 = vmatprep.subr.mxu0 0.0
    %565 = vmatpush1.msra.mxu0 0.0
    %566 = vmatprep.subr.mxu0 0.0
    %567 = vmatpush1.msra.mxu0 0.0
    %568 = vmatprep.subr.mxu0 0.0
    %569 = vmatpush1.msra.mxu0 0.0
    %570 = vmatprep.subr.mxu0 0.0
    %571 = vmatpush1.msra.mxu0 0.0
    %572 = vmatprep.subr.mxu0 0.0
    %573 = vmatpush1.msra.mxu0 0.0
    %574 = vmatprep.mubr.f32.mxu0 0.0
    %575 = vmatmul.mubr.f32.gmra.mrb[0].mxu0 %v508
    %v576 = vpop.f32.mrb[0].mxu0
    %v577 = vadd.f32 0.0, %v576
    %v578 = vpop.f32.mrb[0].mxu0
    %579 = vdwg.mxu0
    %v596 = vlaneseq
    %v597 = vshrl.u32 %v596, 7
    %v598 = vsub.s32 %v418, %v597
    %v599 = vrot.slane %v100, %v598
    %v600 = vlaneseq
    %v601 = vshrl.u32 %v600, 7
    %v602 = vsub.s32 %v423, %v601
    %v603 = vrot.slane %v101, %v602
    %v604 = vsel %vm428, %v603, %v599
    %v605 = vlaneseq
    %v606 = vshrl.u32 %v605, 7
    %v607 = vsub.s32 %v430, %v606
    %v608 = vrot.slane %v102, %v607
    %v609 = vsel %vm435, %v608, %v604
    %v610 = vlaneseq
    %v611 = vshrl.u32 %v610, 7
    %v612 = vsub.s32 %v437, %v611
    %v613 = vrot.slane %v103, %v612
    %v614 = vsel %vm442, %v613, %v609
    %v615 = vlaneseq
    %v616 = vshrl.u32 %v615, 7
    %v617 = vsub.s32 %v418, %v616
    %v618 = vrot.slane %v104, %v617
    %v619 = vlaneseq
    %v620 = vshrl.u32 %v619, 7
    %v621 = vsub.s32 %v423, %v620
    %v622 = vrot.slane %v105, %v621
    %v623 = vsel %vm428, %v622, %v618
    %v624 = vlaneseq
    %v625 = vshrl.u32 %v624, 7
    %v626 = vsub.s32 %v430, %v625
    %v627 = vrot.slane %v106, %v626
    %v628 = vsel %vm435, %v627, %v623
    %v629 = vlaneseq
    %v630 = vshrl.u32 %v629, 7
    %v631 = vsub.s32 %v437, %v630
    %v632 = vrot.slane %v107, %v631
    %v633 = vsel %vm442, %v632, %v628
    %v634 = vlaneseq
    %v635 = vshrl.u32 %v634, 7
    %v636 = vsub.s32 %v418, %v635
    %v637 = vrot.slane %v108, %v636
    %v638 = vlaneseq
    %v639 = vshrl.u32 %v638, 7
    %v640 = vsub.s32 %v423, %v639
    %v641 = vrot.slane %v109, %v640
    %v642 = vsel %vm428, %v641, %v637
    %v643 = vlaneseq
    %v644 = vshrl.u32 %v643, 7
    %v645 = vsub.s32 %v430, %v644
    %v646 = vrot.slane %v110, %v645
    %v647 = vsel %vm435, %v646, %v642
    %v648 = vlaneseq
    %v649 = vshrl.u32 %v648, 7
    %v650 = vsub.s32 %v437, %v649
    %v651 = vrot.slane %v111, %v650
    %v652 = vsel %vm442, %v651, %v647
    %v653 = vlaneseq
    %v654 = vshrl.u32 %v653, 7
    %v655 = vsub.s32 %v418, %v654
    %v656 = vrot.slane %v112, %v655
    %v657 = vlaneseq
    %v658 = vshrl.u32 %v657, 7
    %v659 = vsub.s32 %v423, %v658
    %v660 = vrot.slane %v113, %v659
    %v661 = vsel %vm428, %v660, %v656
    %v662 = vlaneseq
    %v663 = vshrl.u32 %v662, 7
    %v664 = vsub.s32 %v430, %v663
    %v665 = vrot.slane %v114, %v664
    %v666 = vsel %vm435, %v665, %v661
    %v667 = vlaneseq
    %v668 = vshrl.u32 %v667, 7
    %v669 = vsub.s32 %v437, %v668
    %v670 = vrot.slane %v115, %v669
    %v671 = vsel %vm442, %v670, %v666
    %v672 = vsel %vm501, %v633, %v614
    %v673 = vsel %vm503, %v652, %v672
    %v674 = vsel %vm505, %v671, %v673
    %v675 = vsel %vm507, %v674, 0
    %677 = vmatprep.subr.mxu0 0.0
    %678 = vmatpush1.msra.mxu0 %v389
    %679 = vmatprep.subr.mxu0 0.0
    %680 = vmatpush1.msra.mxu0 %v390
    %681 = vmatprep.subr.mxu0 0.0
    %682 = vmatpush1.msra.mxu0 %v391
    %683 = vmatprep.subr.mxu0 0.0
    %684 = vmatpush1.msra.mxu0 %v392
    %685 = vmatprep.subr.mxu0 0.0
    %686 = vmatpush1.msra.mxu0 0.0
    %687 = vmatprep.subr.mxu0 0.0
    %688 = vmatpush1.msra.mxu0 0.0
    %689 = vmatprep.subr.mxu0 0.0
    %690 = vmatpush1.msra.mxu0 0.0
    %691 = vmatprep.subr.mxu0 0.0
    %692 = vmatpush1.msra.mxu0 0.0
    %693 = vmatprep.subr.mxu0 0.0
    %694 = vmatpush1.msra.mxu0 0.0
    %695 = vmatprep.subr.mxu0 0.0
    %696 = vmatpush1.msra.mxu0 0.0
    %697 = vmatprep.subr.mxu0 0.0
    %698 = vmatpush1.msra.mxu0 0.0
    %699 = vmatprep.subr.mxu0 0.0
    %700 = vmatpush1.msra.mxu0 0.0
    %701 = vmatprep.subr.mxu0 0.0
    %702 = vmatpush1.msra.mxu0 0.0
    %703 = vmatprep.subr.mxu0 0.0
    %704 = vmatpush1.msra.mxu0 0.0
    %705 = vmatprep.subr.mxu0 0.0
    %706 = vmatpush1.msra.mxu0 0.0
    %707 = vmatprep.subr.mxu0 0.0
    %708 = vmatpush1.msra.mxu0 0.0
    %709 = vmatprep.subr.mxu0 0.0
    %710 = vmatpush1.msra.mxu0 0.0
    %711 = vmatprep.subr.mxu0 0.0
    %712 = vmatpush1.msra.mxu0 0.0
    %713 = vmatprep.subr.mxu0 0.0
    %714 = vmatpush1.msra.mxu0 0.0
    %715 = vmatprep.subr.mxu0 0.0
    %716 = vmatpush1.msra.mxu0 0.0
    %717 = vmatprep.subr.mxu0 0.0
    %718 = vmatpush1.msra.mxu0 0.0
    %719 = vmatprep.subr.mxu0 0.0
    %720 = vmatpush1.msra.mxu0 0.0
    %721 = vmatprep.subr.mxu0 0.0
    %722 = vmatpush1.msra.mxu0 0.0
    %723 = vmatprep.subr.mxu0 0.0
    %724 = vmatpush1.msra.mxu0 0.0
    %725 = vmatprep.subr.mxu0 0.0
    %726 = vmatpush1.msra.mxu0 0.0
    %727 = vmatprep.subr.mxu0 0.0
    %728 = vmatpush1.msra.mxu0 0.0
    %729 = vmatprep.subr.mxu0 0.0
    %730 = vmatpush1.msra.mxu0 0.0
    %731 = vmatprep.subr.mxu0 0.0
    %732 = vmatpush1.msra.mxu0 0.0
    %733 = vmatprep.subr.mxu0 0.0
    %734 = vmatpush1.msra.mxu0 0.0
    %735 = vmatprep.subr.mxu0 0.0
    %736 = vmatpush1.msra.mxu0 0.0
    %737 = vmatprep.subr.mxu0 0.0
    %738 = vmatpush1.msra.mxu0 0.0
    %739 = vmatprep.subr.mxu0 0.0
    %740 = vmatpush1.msra.mxu0 0.0
    %741 = vmatprep.mubr.f32.mxu0 0.0
    %742 = vmatmul.mubr.f32.gmra.mrb[0].mxu0 %v675
    %v743 = vpop.f32.mrb[0].mxu0
    %v744 = vadd.f32 %v577, %v743
    %v745 = vpop.f32.mrb[0].mxu0
    %746 = vdwg.mxu0
    %v763 = vlaneseq
    %v764 = vshrl.u32 %v763, 7
    %v765 = vsub.s32 %v418, %v764
    %v766 = vrot.slane %v117, %v765
    %v767 = vlaneseq
    %v768 = vshrl.u32 %v767, 7
    %v769 = vsub.s32 %v423, %v768
    %v770 = vrot.slane %v119, %v769
    %v771 = vsel %vm428, %v770, %v766
    %v772 = vlaneseq
    %v773 = vshrl.u32 %v772, 7
    %v774 = vsub.s32 %v430, %v773
    %v775 = vrot.slane %v121, %v774
    %v776 = vsel %vm435, %v775, %v771
    %v777 = vlaneseq
    %v778 = vshrl.u32 %v777, 7
    %v779 = vsub.s32 %v437, %v778
    %v780 = vrot.slane %v123, %v779
    %v781 = vsel %vm442, %v780, %v776
    %v782 = vlaneseq
    %v783 = vshrl.u32 %v782, 7
    %v784 = vsub.s32 %v418, %v783
    %v785 = vrot.slane %v125, %v784
    %v786 = vlaneseq
    %v787 = vshrl.u32 %v786, 7
    %v788 = vsub.s32 %v423, %v787
    %v789 = vrot.slane %v127, %v788
    %v790 = vsel %vm428, %v789, %v785
    %v791 = vlaneseq
    %v792 = vshrl.u32 %v791, 7
    %v793 = vsub.s32 %v430, %v792
    %v794 = vrot.slane %v129, %v793
    %v795 = vsel %vm435, %v794, %v790
    %v796 = vlaneseq
    %v797 = vshrl.u32 %v796, 7
    %v798 = vsub.s32 %v437, %v797
    %v799 = vrot.slane %v131, %v798
    %v800 = vsel %vm442, %v799, %v795
    %v801 = vlaneseq
    %v802 = vshrl.u32 %v801, 7
    %v803 = vsub.s32 %v418, %v802
    %v804 = vrot.slane %v133, %v803
    %v805 = vlaneseq
    %v806 = vshrl.u32 %v805, 7
    %v807 = vsub.s32 %v423, %v806
    %v808 = vrot.slane %v135, %v807
    %v809 = vsel %vm428, %v808, %v804
    %v810 = vlaneseq
    %v811 = vshrl.u32 %v810, 7
    %v812 = vsub.s32 %v430, %v811
    %v813 = vrot.slane %v137, %v812
    %v814 = vsel %vm435, %v813, %v809
    %v815 = vlaneseq
    %v816 = vshrl.u32 %v815, 7
    %v817 = vsub.s32 %v437, %v816
    %v818 = vrot.slane %v139, %v817
    %v819 = vsel %vm442, %v818, %v814
    %v820 = vlaneseq
    %v821 = vshrl.u32 %v820, 7
    %v822 = vsub.s32 %v418, %v821
    %v823 = vrot.slane %v141, %v822
    %v824 = vlaneseq
    %v825 = vshrl.u32 %v824, 7
    %v826 = vsub.s32 %v423, %v825
    %v827 = vrot.slane %v143, %v826
    %v828 = vsel %vm428, %v827, %v823
    %v829 = vlaneseq
    %v830 = vshrl.u32 %v829, 7
    %v831 = vsub.s32 %v430, %v830
    %v832 = vrot.slane %v145, %v831
    %v833 = vsel %vm435, %v832, %v828
    %v834 = vlaneseq
    %v835 = vshrl.u32 %v834, 7
    %v836 = vsub.s32 %v437, %v835
    %v837 = vrot.slane %v147, %v836
    %v838 = vsel %vm442, %v837, %v833
    %v839 = vsel %vm501, %v800, %v781
    %v840 = vsel %vm503, %v819, %v839
    %v841 = vsel %vm505, %v838, %v840
    %v842 = vsel %vm507, %v841, 0
    %844 = vmatprep.subr.mxu0 0.0
    %845 = vmatpush1.msra.mxu0 %v397
    %846 = vmatprep.subr.mxu0 0.0
    %847 = vmatpush1.msra.mxu0 %v398
    %848 = vmatprep.subr.mxu0 0.0
    %849 = vmatpush1.msra.mxu0 %v399
    %850 = vmatprep.subr.mxu0 0.0
    %851 = vmatpush1.msra.mxu0 %v400
    %852 = vmatprep.subr.mxu0 0.0
    %853 = vmatpush1.msra.mxu0 0.0
    %854 = vmatprep.subr.mxu0 0.0
    %855 = vmatpush1.msra.mxu0 0.0
    %856 = vmatprep.subr.mxu0 0.0
    %857 = vmatpush1.msra.mxu0 0.0
    %858 = vmatprep.subr.mxu0 0.0
    %859 = vmatpush1.msra.mxu0 0.0
    %860 = vmatprep.subr.mxu0 0.0
    %861 = vmatpush1.msra.mxu0 0.0
    %862 = vmatprep.subr.mxu0 0.0
    %863 = vmatpush1.msra.mxu0 0.0
    %864 = vmatprep.subr.mxu0 0.0
    %865 = vmatpush1.msra.mxu0 0.0
    %866 = vmatprep.subr.mxu0 0.0
    %867 = vmatpush1.msra.mxu0 0.0
    %868 = vmatprep.subr.mxu0 0.0
    %869 = vmatpush1.msra.mxu0 0.0
    %870 = vmatprep.subr.mxu0 0.0
    %871 = vmatpush1.msra.mxu0 0.0
    %872 = vmatprep.subr.mxu0 0.0
    %873 = vmatpush1.msra.mxu0 0.0
    %874 = vmatprep.subr.mxu0 0.0
    %875 = vmatpush1.msra.mxu0 0.0
    %876 = vmatprep.subr.mxu0 0.0
    %877 = vmatpush1.msra.mxu0 0.0
    %878 = vmatprep.subr.mxu0 0.0
    %879 = vmatpush1.msra.mxu0 0.0
    %880 = vmatprep.subr.mxu0 0.0
    %881 = vmatpush1.msra.mxu0 0.0
    %882 = vmatprep.subr.mxu0 0.0
    %883 = vmatpush1.msra.mxu0 0.0
    %884 = vmatprep.subr.mxu0 0.0
    %885 = vmatpush1.msra.mxu0 0.0
    %886 = vmatprep.subr.mxu0 0.0
    %887 = vmatpush1.msra.mxu0 0.0
    %888 = vmatprep.subr.mxu0 0.0
    %889 = vmatpush1.msra.mxu0 0.0
    %890 = vmatprep.subr.mxu0 0.0
    %891 = vmatpush1.msra.mxu0 0.0
    %892 = vmatprep.subr.mxu0 0.0
    %893 = vmatpush1.msra.mxu0 0.0
    %894 = vmatprep.subr.mxu0 0.0
    %895 = vmatpush1.msra.mxu0 0.0
    %896 = vmatprep.subr.mxu0 0.0
    %897 = vmatpush1.msra.mxu0 0.0
    %898 = vmatprep.subr.mxu0 0.0
    %899 = vmatpush1.msra.mxu0 0.0
    %900 = vmatprep.subr.mxu0 0.0
    %901 = vmatpush1.msra.mxu0 0.0
    %902 = vmatprep.subr.mxu0 0.0
    %903 = vmatpush1.msra.mxu0 0.0
    %904 = vmatprep.subr.mxu0 0.0
    %905 = vmatpush1.msra.mxu0 0.0
    %906 = vmatprep.subr.mxu0 0.0
    %907 = vmatpush1.msra.mxu0 0.0
    %908 = vmatprep.mubr.f32.mxu0 0.0
    %909 = vmatmul.mubr.f32.gmra.mrb[0].mxu0 %v842
    %v910 = vpop.f32.mrb[0].mxu0
    %v911 = vadd.f32 0.0, %v910
    %v912 = vpop.f32.mrb[0].mxu0
    %913 = vdwg.mxu0
    %v914 = vadd.f32 %v744, %v911
    %v915 = vld [vmem:[%s2] sm:$0x1]
    %v917 = vlaneseq
    %v918 = vshrl.u32 %v917, 7
    %v919 = vsub.s32 0, %v918
    %v920 = vrot.slane %v915, %v919
    %v922 = vadd.f32 %v914, %v920
    %v923 = vmax.f32 %v922, 0.0
    %v924 = vld [vmem:[%s3] sm:$0x3]
    %v925 = vld [vmem:[%s4] sm:$0x1]
    %v927 = vlaneseq
    %v928 = vshrl.u32 %v927, 7
    %v929 = vsub.s32 0, %v928
    %v930 = vrot.slane %v925, %v929
    %vm932 = vcmask 15360
    %v934 = vsel %vm932, %v923, 0
    %vm936 = vcmask 1041408
    %v938 = vsel %vm936, %v924, 0
    %940 = vmatprep.subr.mxu0 0.0
    %941 = vmatpush1.msra.mxu0 %v938
    %942 = vmatprep.subr.mxu0 0.0
    %943 = vmatpush1.msra.mxu0 0.0
    %944 = vmatprep.subr.mxu0 0.0
    %945 = vmatpush1.msra.mxu0 0.0
    %946 = vmatprep.subr.mxu0 0.0
    %947 = vmatpush1.msra.mxu0 0.0
    %948 = vmatprep.subr.mxu0 0.0
    %949 = vmatpush1.msra.mxu0 0.0
    %950 = vmatprep.subr.mxu0 0.0
    %951 = vmatpush1.msra.mxu0 0.0
    %952 = vmatprep.subr.mxu0 0.0
    %953 = vmatpush1.msra.mxu0 0.0
    %954 = vmatprep.subr.mxu0 0.0
    %955 = vmatpush1.msra.mxu0 0.0
    %956 = vmatprep.subr.mxu0 0.0
    %957 = vmatpush1.msra.mxu0 0.0
    %958 = vmatprep.subr.mxu0 0.0
    %959 = vmatpush1.msra.mxu0 0.0
    %960 = vmatprep.subr.mxu0 0.0
    %961 = vmatpush1.msra.mxu0 0.0
    %962 = vmatprep.subr.mxu0 0.0
    %963 = vmatpush1.msra.mxu0 0.0
    %964 = vmatprep.subr.mxu0 0.0
    %965 = vmatpush1.msra.mxu0 0.0
    %966 = vmatprep.subr.mxu0 0.0
    %967 = vmatpush1.msra.mxu0 0.0
    %968 = vmatprep.subr.mxu0 0.0
    %969 = vmatpush1.msra.mxu0 0.0
    %970 = vmatprep.subr.mxu0 0.0
    %971 = vmatpush1.msra.mxu0 0.0
    %972 = vmatprep.subr.mxu0 0.0
    %973 = vmatpush1.msra.mxu0 0.0
    %974 = vmatprep.subr.mxu0 0.0
    %975 = vmatpush1.msra.mxu0 0.0
    %976 = vmatprep.subr.mxu0 0.0
    %977 = vmatpush1.msra.mxu0 0.0
    %978 = vmatprep.subr.mxu0 0.0
    %979 = vmatpush1.msra.mxu0 0.0
    %980 = vmatprep.subr.mxu0 0.0
    %981 = vmatpush1.msra.mxu0 0.0
    %982 = vmatprep.subr.mxu0 0.0
    %983 = vmatpush1.msra.mxu0 0.0
    %984 = vmatprep.subr.mxu0 0.0
    %985 = vmatpush1.msra.mxu0 0.0
    %986 = vmatprep.subr.mxu0 0.0
    %987 = vmatpush1.msra.mxu0 0.0
    %988 = vmatprep.subr.mxu0 0.0
    %989 = vmatpush1.msra.mxu0 0.0
    %990 = vmatprep.subr.mxu0 0.0
    %991 = vmatpush1.msra.mxu0 0.0
    %992 = vmatprep.subr.mxu0 0.0
    %993 = vmatpush1.msra.mxu0 0.0
    %994 = vmatprep.subr.mxu0 0.0
    %995 = vmatpush1.msra.mxu0 0.0
    %996 = vmatprep.subr.mxu0 0.0
    %997 = vmatpush1.msra.mxu0 0.0
    %998 = vmatprep.subr.mxu0 0.0
    %999 = vmatpush1.msra.mxu0 0.0
    %1000 = vmatprep.subr.mxu0 0.0
    %1001 = vmatpush1.msra.mxu0 0.0
    %1002 = vmatprep.subr.mxu0 0.0
    %1003 = vmatpush1.msra.mxu0 0.0
    %1004 = vmatprep.mubr.f32.mxu0 0.0
    %1005 = vmatmul.mubr.f32.gmra.mrb[0].mxu0 %v934
    %v1006 = vpop.f32.mrb[0].mxu0
    %v1007 = vadd.f32 %v930, %v1006
    %v1008 = vpop.f32.mrb[0].mxu0
    %1009 = vdwg.mxu0
    %v1010 = vxor.u32 %v1007, 2147483648
    %v1011 = vmul.f32 %v1010, 1.442695
    %v1012 = vpow.pop %v1011
    %v1013 = vadd.f32 %v1012, 1.0
    %v1014 = vrcp.pop %v1013
    %v1015 = vmul.f32 1.0, %v1014
    %v1016 = vmax.f32 %v1015, 1e-06
    %v1017 = vmin.f32 %v1016, 3.4028235e+38
    %v1018 = vlaneseq
    %v1019 = vshrl.u32 %v1018, 7
    %v1020 = vsub.s32 0, %v1019
    %v1021 = vrot.slane %v1017, %v1020
    %1023 = vbcast.lane.b32.xlu0 %v1021, 256
    %v1024 = vpop.permute.xlu0 %1023
    %s1026 = sor.u32 256, 8
    %1027 = vbcast.lane.b32.xlu0 %v1021, %s1026
    %v1028 = vpop.permute.xlu0 %1027
    %s1030 = sor.u32 256, 16
    %1031 = vbcast.lane.b32.xlu0 %v1021, %s1030
    %v1032 = vpop.permute.xlu0 %1031
    %s1034 = sor.u32 256, 24
    %1035 = vbcast.lane.b32.xlu0 %v1021, %s1034
    %v1036 = vpop.permute.xlu0 %1035
    %v1037 = vlaneseq
    %v1038 = vshrl.u32 %v1037, 7
    %v1039 = vsub.s32 1, %v1038
    %v1040 = vrot.slane %v1017, %v1039
    %1042 = vbcast.lane.b32.xlu0 %v1040, 256
    %v1043 = vpop.permute.xlu0 %1042
    %s1045 = sor.u32 256, 8
    %1046 = vbcast.lane.b32.xlu0 %v1040, %s1045
    %v1047 = vpop.permute.xlu0 %1046
    %s1049 = sor.u32 256, 16
    %1050 = vbcast.lane.b32.xlu0 %v1040, %s1049
    %v1051 = vpop.permute.xlu0 %1050
    %s1053 = sor.u32 256, 24
    %1054 = vbcast.lane.b32.xlu0 %v1040, %s1053
    %v1055 = vpop.permute.xlu0 %1054
    %v1056 = vlaneseq
    %v1057 = vshrl.u32 %v1056, 7
    %v1058 = vsub.s32 2, %v1057
    %v1059 = vrot.slane %v1017, %v1058
    %1061 = vbcast.lane.b32.xlu0 %v1059, 256
    %v1062 = vpop.permute.xlu0 %1061
    %s1064 = sor.u32 256, 8
    %1065 = vbcast.lane.b32.xlu0 %v1059, %s1064
    %v1066 = vpop.permute.xlu0 %1065
    %s1068 = sor.u32 256, 16
    %1069 = vbcast.lane.b32.xlu0 %v1059, %s1068
    %v1070 = vpop.permute.xlu0 %1069
    %s1072 = sor.u32 256, 24
    %1073 = vbcast.lane.b32.xlu0 %v1059, %s1072
    %v1074 = vpop.permute.xlu0 %1073
    %v1075 = vlaneseq
    %v1076 = vshrl.u32 %v1075, 7
    %v1077 = vsub.s32 3, %v1076
    %v1078 = vrot.slane %v1017, %v1077
    %1080 = vbcast.lane.b32.xlu0 %v1078, 256
    %v1081 = vpop.permute.xlu0 %1080
    %s1083 = sor.u32 256, 8
    %1084 = vbcast.lane.b32.xlu0 %v1078, %s1083
    %v1085 = vpop.permute.xlu0 %1084
    %s1087 = sor.u32 256, 16
    %1088 = vbcast.lane.b32.xlu0 %v1078, %s1087
    %v1089 = vpop.permute.xlu0 %1088
    %s1091 = sor.u32 256, 24
    %1092 = vbcast.lane.b32.xlu0 %v1078, %s1091
    %v1093 = vpop.permute.xlu0 %1092
    %v1094 = vmul.f32 %v1024, %v51
    %v1095 = vmul.f32 %v1028, %v52
    %v1096 = vmul.f32 %v1032, %v53
    %v1097 = vmul.f32 %v1036, %v54
    %v1098 = vmul.f32 %v1043, %v55
    %v1099 = vmul.f32 %v1047, %v56
    %v1100 = vmul.f32 %v1051, %v57
    %v1101 = vmul.f32 %v1055, %v58
    %v1102 = vmul.f32 %v1062, %v59
    %v1103 = vmul.f32 %v1066, %v60
    %v1104 = vmul.f32 %v1070, %v61
    %v1105 = vmul.f32 %v1074, %v62
    %v1106 = vmul.f32 %v1081, %v63
    %v1107 = vmul.f32 %v1085, %v64
    %v1108 = vmul.f32 %v1089, %v65
    %v1109 = vmul.f32 %v1093, %v66
    %v1110 = vadd.f32 %v1094, %v1095
    %v1111 = vadd.f32 %v1110, %v1096
    %v1112 = vadd.f32 %v1111, %v1097
    %v1113 = vrot.slane %v1112, 4
    %v1114 = vadd.f32 %v1112, %v1113
    %v1115 = vrot.slane %v1114, 2
    %v1116 = vadd.f32 %v1114, %v1115
    %v1117 = vrot.slane %v1116, 1
    %v1118 = vadd.f32 %v1116, %v1117
    %v1119 = vadd.f32 %v1098, %v1099
    %v1120 = vadd.f32 %v1119, %v1100
    %v1121 = vadd.f32 %v1120, %v1101
    %v1122 = vrot.slane %v1121, 4
    %v1123 = vadd.f32 %v1121, %v1122
    %v1124 = vrot.slane %v1123, 2
    %v1125 = vadd.f32 %v1123, %v1124
    %v1126 = vrot.slane %v1125, 1
    %v1127 = vadd.f32 %v1125, %v1126
    %v1128 = vadd.f32 %v1102, %v1103
    %v1129 = vadd.f32 %v1128, %v1104
    %v1130 = vadd.f32 %v1129, %v1105
    %v1131 = vrot.slane %v1130, 4
    %v1132 = vadd.f32 %v1130, %v1131
    %v1133 = vrot.slane %v1132, 2
    %v1134 = vadd.f32 %v1132, %v1133
    %v1135 = vrot.slane %v1134, 1
    %v1136 = vadd.f32 %v1134, %v1135
    %v1137 = vadd.f32 %v1106, %v1107
    %v1138 = vadd.f32 %v1137, %v1108
    %v1139 = vadd.f32 %v1138, %v1109
    %v1140 = vrot.slane %v1139, 4
    %v1141 = vadd.f32 %v1139, %v1140
    %v1142 = vrot.slane %v1141, 2
    %v1143 = vadd.f32 %v1141, %v1142
    %v1144 = vrot.slane %v1143, 1
    %v1145 = vadd.f32 %v1143, %v1144
    %v1146 = vrcp.pop 32.0
    %v1147 = vmul.f32 %v1118, %v1146
    %v1148 = vmul.f32 %v1127, %v1146
    %v1149 = vmul.f32 %v1136, %v1146
    %v1150 = vmul.f32 %v1145, %v1146
    %v1151 = vmax.f32 %v1094, %v1095
    %v1152 = vmax.f32 %v1151, %v1096
    %v1153 = vmax.f32 %v1152, %v1097
    %v1154 = vrot.slane %v1153, 4
    %v1155 = vmax.f32 %v1153, %v1154
    %v1156 = vrot.slane %v1155, 2
    %v1157 = vmax.f32 %v1155, %v1156
    %v1158 = vrot.slane %v1157, 1
    %v1159 = vmax.f32 %v1157, %v1158
    %v1160 = vmax.f32 %v1098, %v1099
    %v1161 = vmax.f32 %v1160, %v1100
    %v1162 = vmax.f32 %v1161, %v1101
    %v1163 = vrot.slane %v1162, 4
    %v1164 = vmax.f32 %v1162, %v1163
    %v1165 = vrot.slane %v1164, 2
    %v1166 = vmax.f32 %v1164, %v1165
    %v1167 = vrot.slane %v1166, 1
    %v1168 = vmax.f32 %v1166, %v1167
    %v1169 = vmax.f32 %v1102, %v1103
    %v1170 = vmax.f32 %v1169, %v1104
    %v1171 = vmax.f32 %v1170, %v1105
    %v1172 = vrot.slane %v1171, 4
    %v1173 = vmax.f32 %v1171, %v1172
    %v1174 = vrot.slane %v1173, 2
    %v1175 = vmax.f32 %v1173, %v1174
    %v1176 = vrot.slane %v1175, 1
    %v1177 = vmax.f32 %v1175, %v1176
    %v1178 = vmax.f32 %v1106, %v1107
    %v1179 = vmax.f32 %v1178, %v1108
    %v1180 = vmax.f32 %v1179, %v1109
    %v1181 = vrot.slane %v1180, 4
    %v1182 = vmax.f32 %v1180, %v1181
    %v1183 = vrot.slane %v1182, 2
    %v1184 = vmax.f32 %v1182, %v1183
    %v1185 = vrot.slane %v1184, 1
    %v1186 = vmax.f32 %v1184, %v1185
    %v1187 = vsub.f32 %v1094, %v1147
    %v1188 = vsub.f32 %v1095, %v1147
    %v1189 = vsub.f32 %v1096, %v1147
    %v1190 = vsub.f32 %v1097, %v1147
    %v1191 = vsub.f32 %v1098, %v1148
    %v1192 = vsub.f32 %v1099, %v1148
    %v1193 = vsub.f32 %v1100, %v1148
    %v1194 = vsub.f32 %v1101, %v1148
    %v1195 = vsub.f32 %v1102, %v1149
    %v1196 = vsub.f32 %v1103, %v1149
    %v1197 = vsub.f32 %v1104, %v1149
    %v1198 = vsub.f32 %v1105, %v1149
    %v1199 = vsub.f32 %v1106, %v1150
    %v1200 = vsub.f32 %v1107, %v1150
    %v1201 = vsub.f32 %v1108, %v1150
    %v1202 = vsub.f32 %v1109, %v1150
    %v1203 = vmul.f32 %v1187, %v1187
    %v1204 = vmul.f32 %v1188, %v1188
    %v1205 = vmul.f32 %v1189, %v1189
    %v1206 = vmul.f32 %v1190, %v1190
    %v1207 = vmul.f32 %v1191, %v1191
    %v1208 = vmul.f32 %v1192, %v1192
    %v1209 = vmul.f32 %v1193, %v1193
    %v1210 = vmul.f32 %v1194, %v1194
    %v1211 = vmul.f32 %v1195, %v1195
    %v1212 = vmul.f32 %v1196, %v1196
    %v1213 = vmul.f32 %v1197, %v1197
    %v1214 = vmul.f32 %v1198, %v1198
    %v1215 = vmul.f32 %v1199, %v1199
    %v1216 = vmul.f32 %v1200, %v1200
    %v1217 = vmul.f32 %v1201, %v1201
    %v1218 = vmul.f32 %v1202, %v1202
    %v1219 = vadd.f32 %v1203, %v1204
    %v1220 = vadd.f32 %v1219, %v1205
    %v1221 = vadd.f32 %v1220, %v1206
    %v1222 = vrot.slane %v1221, 4
    %v1223 = vadd.f32 %v1221, %v1222
    %v1224 = vrot.slane %v1223, 2
    %v1225 = vadd.f32 %v1223, %v1224
    %v1226 = vrot.slane %v1225, 1
    %v1227 = vadd.f32 %v1225, %v1226
    %v1228 = vadd.f32 %v1207, %v1208
    %v1229 = vadd.f32 %v1228, %v1209
    %v1230 = vadd.f32 %v1229, %v1210
    %v1231 = vrot.slane %v1230, 4
    %v1232 = vadd.f32 %v1230, %v1231
    %v1233 = vrot.slane %v1232, 2
    %v1234 = vadd.f32 %v1232, %v1233
    %v1235 = vrot.slane %v1234, 1
    %v1236 = vadd.f32 %v1234, %v1235
    %v1237 = vadd.f32 %v1211, %v1212
    %v1238 = vadd.f32 %v1237, %v1213
    %v1239 = vadd.f32 %v1238, %v1214
    %v1240 = vrot.slane %v1239, 4
    %v1241 = vadd.f32 %v1239, %v1240
    %v1242 = vrot.slane %v1241, 2
    %v1243 = vadd.f32 %v1241, %v1242
    %v1244 = vrot.slane %v1243, 1
    %v1245 = vadd.f32 %v1243, %v1244
    %v1246 = vadd.f32 %v1215, %v1216
    %v1247 = vadd.f32 %v1246, %v1217
    %v1248 = vadd.f32 %v1247, %v1218
    %v1249 = vrot.slane %v1248, 4
    %v1250 = vadd.f32 %v1248, %v1249
    %v1251 = vrot.slane %v1250, 2
    %v1252 = vadd.f32 %v1250, %v1251
    %v1253 = vrot.slane %v1252, 1
    %v1254 = vadd.f32 %v1252, %v1253
    %v1255 = vrcp.pop 31.0
    %v1256 = vmul.f32 %v1227, %v1255
    %v1257 = vmul.f32 %v1236, %v1255
    %v1258 = vmul.f32 %v1245, %v1255
    %v1259 = vmul.f32 %v1254, %v1255
    %v1260 = vmax.f32 %v1256, 0.0
    %v1261 = vmax.f32 %v1257, 0.0
    %v1262 = vmax.f32 %v1258, 0.0
    %v1263 = vmax.f32 %v1259, 0.0
    %v1264 = vrsqrt.pop %v1260
    %v1265 = vmul.f32 %v1260, %v1264
    %vm1266 = vcmp.eq.f32.partialorder %v1260, inf
    %v1267 = vsel %vm1266, %v1260, %v1265
    %vm1268 = vcmp.eq.f32.partialorder %v1260, 0.0
    %v1269 = vand.u32 %v1260, 2147483648
    %v1270 = vsel %vm1268, %v1269, %v1267
    %v1271 = vrsqrt.pop %v1261
    %v1272 = vmul.f32 %v1261, %v1271
    %vm1273 = vcmp.eq.f32.partialorder %v1261, inf
    %v1274 = vsel %vm1273, %v1261, %v1272
    %vm1275 = vcmp.eq.f32.partialorder %v1261, 0.0
    %v1276 = vand.u32 %v1261, 2147483648
    %v1277 = vsel %vm1275, %v1276, %v1274
    %v1278 = vrsqrt.pop %v1262
    %v1279 = vmul.f32 %v1262, %v1278
    %vm1280 = vcmp.eq.f32.partialorder %v1262, inf
    %v1281 = vsel %vm1280, %v1262, %v1279
    %vm1282 = vcmp.eq.f32.partialorder %v1262, 0.0
    %v1283 = vand.u32 %v1262, 2147483648
    %v1284 = vsel %vm1282, %v1283, %v1281
    %v1285 = vrsqrt.pop %v1263
    %v1286 = vmul.f32 %v1263, %v1285
    %vm1287 = vcmp.eq.f32.partialorder %v1263, inf
    %v1288 = vsel %vm1287, %v1263, %v1286
    %vm1289 = vcmp.eq.f32.partialorder %v1263, 0.0
    %v1290 = vand.u32 %v1263, 2147483648
    %v1291 = vsel %vm1289, %v1290, %v1288
    %v1292 = vmax.f32 %v1270, 1e-10
    %v1293 = vmax.f32 %v1277, 1e-10
    %v1294 = vmax.f32 %v1284, 1e-10
    %v1295 = vmax.f32 %v1291, 1e-10
    %v1296 = vmin.f32 %v1292, 3.4028235e+38
    %v1297 = vmin.f32 %v1293, 3.4028235e+38
    %v1298 = vmin.f32 %v1294, 3.4028235e+38
    %v1299 = vmin.f32 %v1295, 3.4028235e+38
    %s1300 = sld [smem:[#allocation6]]
    %s1301 = sld [smem:[#allocation6 + $0x7]]
    %s1302 = sld [smem:[#allocation6 + $0xe]]
    %vm1303 = vcmp.ge.s32.totalorder %v418, 3
    %vm1304 = vcmp.lt.s32.totalorder %v418, 131
    %vm1305 = vmand %vm1303, %vm1304
    %v1318 = vrot.slane %v1148, 7
    %v1319 = vsel %vm501, %v1318, %v1147
    %v1320 = vrot.slane %v1149, 6
    %v1321 = vsel %vm503, %v1320, %v1319
    %v1322 = vrot.slane %v1150, 5
    %v1323 = vsel %vm505, %v1322, %v1321
    %v1324 = vrot.slane %v1297, 7
    %v1325 = vsel %vm501, %v1324, %v1296
    %v1326 = vrot.slane %v1298, 6
    %v1327 = vsel %vm503, %v1326, %v1325
    %v1328 = vrot.slane %v1299, 5
    %v1329 = vsel %vm505, %v1328, %v1327
    %v1330 = vrot.slane %v1168, 7
    %v1331 = vsel %vm501, %v1330, %v1159
    %v1332 = vrot.slane %v1177, 6
    %v1333 = vsel %vm503, %v1332, %v1331
    %v1334 = vrot.slane %v1186, 5
    %v1335 = vsel %vm505, %v1334, %v1333
    %1339 = vrot.lane.b32.xlu0 %v1323, 3
    %v1340 = vpop.permute.xlu0 %1339
    %1341 = vrot.lane.b32.xlu0 %v1329, 3
    %v1342 = vpop.permute.xlu0 %1341
    %1343 = vrot.lane.b32.xlu0 %v1335, 3
    %v1344 = vpop.permute.xlu0 %1343
    %v1345 = vsel %vm1305, 1, 0
    %vm1346 = vcmp.eq.s32.totalorder %v1345, 1
    %v1347 = vsel %vm1346, %v1340, 0.0
    %v1348 = vsel %vm1346, %v1342, 0.0
    %v1349 = vsel %vm1346, %v1344, 0.0
    %v1350 = vstv %s1300
    %v1351 = vmul.f32 %v1350, %v1347
    %v1352 = vadd.f32 %v1351, 0.0
    %v1353 = vstv %s1301
    %v1354 = vmul.f32 %v1353, %v1348
    %v1355 = vadd.f32 %v1352, %v1354
    %v1356 = vstv %s1302
    %v1357 = vmul.f32 %v1356, %v1349
    %v1358 = vadd.f32 %v1355, %v1357
    %s1359 = sld [smem:[#allocation6 + $0x1]]
    %s1360 = sld [smem:[#allocation6 + $0x8]]
    %s1361 = sld [smem:[#allocation6 + $0xf]]
    %vm1362 = vcmp.ge.s32.totalorder %v418, 2
    %vm1363 = vcmp.lt.s32.totalorder %v418, 130
    %vm1364 = vmand %vm1362, %vm1363
    %1365 = vrot.lane.b32.xlu0 %v1323, 2
    %v1366 = vpop.permute.xlu0 %1365
    %1367 = vrot.lane.b32.xlu0 %v1329, 2
    %v1368 = vpop.permute.xlu0 %1367
    %1369 = vrot.lane.b32.xlu0 %v1335, 2
    %v1370 = vpop.permute.xlu0 %1369
    %v1371 = vsel %vm1364, 1, 0
    %vm1372 = vcmp.eq.s32.totalorder %v1371, 1
    %v1373 = vsel %vm1372, %v1366, 0.0
    %v1374 = vsel %vm1372, %v1368, 0.0
    %v1375 = vsel %vm1372, %v1370, 0.0
    %v1376 = vstv %s1359
    %v1377 = vmul.f32 %v1376, %v1373
    %v1378 = vadd.f32 %v1358, %v1377
    %v1379 = vstv %s1360
    %v1380 = vmul.f32 %v1379, %v1374
    %v1381 = vadd.f32 %v1378, %v1380
    %v1382 = vstv %s1361
    %v1383 = vmul.f32 %v1382, %v1375
    %v1384 = vadd.f32 %v1381, %v1383
    %s1385 = sld [smem:[#allocation6 + $0x2]]
    %s1386 = sld [smem:[#allocation6 + $0x9]]
    %s1387 = sld [smem:[#allocation6 + $0x10]]
    %vm1388 = vcmp.ge.s32.totalorder %v418, 1
    %vm1389 = vcmp.lt.s32.totalorder %v418, 129
    %vm1390 = vmand %vm1388, %vm1389
    %1391 = vrot.lane.b32.xlu0 %v1323, 1
    %v1392 = vpop.permute.xlu0 %1391
    %1393 = vrot.lane.b32.xlu0 %v1329, 1
    %v1394 = vpop.permute.xlu0 %1393
    %1395 = vrot.lane.b32.xlu0 %v1335, 1
    %v1396 = vpop.permute.xlu0 %1395
    %v1397 = vsel %vm1390, 1, 0
    %vm1398 = vcmp.eq.s32.totalorder %v1397, 1
    %v1399 = vsel %vm1398, %v1392, 0.0
    %v1400 = vsel %vm1398, %v1394, 0.0
    %v1401 = vsel %vm1398, %v1396, 0.0
    %v1402 = vstv %s1385
    %v1403 = vmul.f32 %v1402, %v1399
    %v1404 = vadd.f32 %v1384, %v1403
    %v1405 = vstv %s1386
    %v1406 = vmul.f32 %v1405, %v1400
    %v1407 = vadd.f32 %v1404, %v1406
    %v1408 = vstv %s1387
    %v1409 = vmul.f32 %v1408, %v1401
    %v1410 = vadd.f32 %v1407, %v1409
    %s1411 = sld [smem:[#allocation6 + $0x3]]
    %s1412 = sld [smem:[#allocation6 + $0xa]]
    %s1413 = sld [smem:[#allocation6 + $0x11]]
    %v1414 = vstv %s1411
    %v1415 = vmul.f32 %v1414, %v1147
    %v1416 = vmul.f32 %v1414, %v1148
    %v1417 = vmul.f32 %v1414, %v1149
    %v1418 = vmul.f32 %v1414, %v1150
    %v1423 = vrot.slane %v1416, 7
    %v1424 = vsel %vm501, %v1423, %v1415
    %v1425 = vrot.slane %v1417, 6
    %v1426 = vsel %vm503, %v1425, %v1424
    %v1427 = vrot.slane %v1418, 5
    %v1428 = vsel %vm505, %v1427, %v1426
    %v1430 = vadd.f32 %v1410, %v1428
    %v1431 = vstv %s1412
    %v1432 = vmul.f32 %v1431, %v1296
    %v1433 = vmul.f32 %v1431, %v1297
    %v1434 = vmul.f32 %v1431, %v1298
    %v1435 = vmul.f32 %v1431, %v1299
    %v1440 = vrot.slane %v1433, 7
    %v1441 = vsel %vm501, %v1440, %v1432
    %v1442 = vrot.slane %v1434, 6
    %v1443 = vsel %vm503, %v1442, %v1441
    %v1444 = vrot.slane %v1435, 5
    %v1445 = vsel %vm505, %v1444, %v1443
    %v1447 = vadd.f32 %v1430, %v1445
    %v1448 = vstv %s1413
    %v1449 = vmul.f32 %v1448, %v1159
    %v1450 = vmul.f32 %v1448, %v1168
    %v1451 = vmul.f32 %v1448, %v1177
    %v1452 = vmul.f32 %v1448, %v1186
    %v1457 = vrot.slane %v1450, 7
    %v1458 = vsel %vm501, %v1457, %v1449
    %v1459 = vrot.slane %v1451, 6
    %v1460 = vsel %vm503, %v1459, %v1458
    %v1461 = vrot.slane %v1452, 5
    %v1462 = vsel %vm505, %v1461, %v1460
    %v1464 = vadd.f32 %v1447, %v1462
    %s1465 = sld [smem:[#allocation6 + $0x4]]
    %s1466 = sld [smem:[#allocation6 + $0xb]]
    %s1467 = sld [smem:[#allocation6 + $0x12]]
    %vm1468 = vcmp.ge.s32.totalorder %v418, 4294967295
    %vm1469 = vcmp.lt.s32.totalorder %v418, 127
    %vm1470 = vmand %vm1468, %vm1469
    %1471 = vrot.lane.b32.xlu0 %v1323, 127
    %v1472 = vpop.permute.xlu0 %1471
    %1473 = vrot.lane.b32.xlu0 %v1329, 127
    %v1474 = vpop.permute.xlu0 %1473
    %1475 = vrot.lane.b32.xlu0 %v1335, 127
    %v1476 = vpop.permute.xlu0 %1475
    %v1477 = vsel %vm1470, 1, 0
    %vm1478 = vcmp.eq.s32.totalorder %v1477, 1
    %v1479 = vsel %vm1478, %v1472, 0.0
    %v1480 = vsel %vm1478, %v1474, 0.0
    %v1481 = vsel %vm1478, %v1476, 0.0
    %v1482 = vstv %s1465
    %v1483 = vmul.f32 %v1482, %v1479
    %v1484 = vadd.f32 %v1464, %v1483
    %v1485 = vstv %s1466
    %v1486 = vmul.f32 %v1485, %v1480
    %v1487 = vadd.f32 %v1484, %v1486
    %v1488 = vstv %s1467
    %v1489 = vmul.f32 %v1488, %v1481
    %v1490 = vadd.f32 %v1487, %v1489
    %s1491 = sld [smem:[#allocation6 + $0x5]]
    %s1492 = sld [smem:[#allocation6 + $0xc]]
    %s1493 = sld [smem:[#allocation6 + $0x13]]
    %vm1494 = vcmp.ge.s32.totalorder %v418, 4294967294
    %vm1495 = vcmp.lt.s32.totalorder %v418, 126
    %vm1496 = vmand %vm1494, %vm1495
    %1497 = vrot.lane.b32.xlu0 %v1323, 126
    %v1498 = vpop.permute.xlu0 %1497
    %1499 = vrot.lane.b32.xlu0 %v1329, 126
    %v1500 = vpop.permute.xlu0 %1499
    %1501 = vrot.lane.b32.xlu0 %v1335, 126
    %v1502 = vpop.permute.xlu0 %1501
    %v1503 = vsel %vm1496, 1, 0
    %vm1504 = vcmp.eq.s32.totalorder %v1503, 1
    %v1505 = vsel %vm1504, %v1498, 0.0
    %v1506 = vsel %vm1504, %v1500, 0.0
    %v1507 = vsel %vm1504, %v1502, 0.0
    %v1508 = vstv %s1491
    %v1509 = vmul.f32 %v1508, %v1505
    %v1510 = vadd.f32 %v1490, %v1509
    %v1511 = vstv %s1492
    %v1512 = vmul.f32 %v1511, %v1506
    %v1513 = vadd.f32 %v1510, %v1512
    %v1514 = vstv %s1493
    %v1515 = vmul.f32 %v1514, %v1507
    %v1516 = vadd.f32 %v1513, %v1515
    %s1517 = sld [smem:[#allocation6 + $0x6]]
    %s1518 = sld [smem:[#allocation6 + $0xd]]
    %s1519 = sld [smem:[#allocation6 + $0x14]]
    %vm1520 = vcmp.ge.s32.totalorder %v418, 4294967293
    %vm1521 = vcmp.lt.s32.totalorder %v418, 125
    %vm1522 = vmand %vm1520, %vm1521
    %1523 = vrot.lane.b32.xlu0 %v1323, 125
    %v1524 = vpop.permute.xlu0 %1523
    %1525 = vrot.lane.b32.xlu0 %v1329, 125
    %v1526 = vpop.permute.xlu0 %1525
    %1527 = vrot.lane.b32.xlu0 %v1335, 125
    %v1528 = vpop.permute.xlu0 %1527
    %v1529 = vsel %vm1522, 1, 0
    %vm1530 = vcmp.eq.s32.totalorder %v1529, 1
    %v1531 = vsel %vm1530, %v1524, 0.0
    %v1532 = vsel %vm1530, %v1526, 0.0
    %v1533 = vsel %vm1530, %v1528, 0.0
    %v1534 = vstv %s1517
    %v1535 = vmul.f32 %v1534, %v1531
    %v1536 = vadd.f32 %v1516, %v1535
    %v1537 = vstv %s1518
    %v1538 = vmul.f32 %v1537, %v1532
    %v1539 = vadd.f32 %v1536, %v1538
    %v1540 = vstv %s1519
    %v1541 = vmul.f32 %v1540, %v1533
    %v1542 = vadd.f32 %v1539, %v1541
    %v1543 = vxor.u32 %v1542, 2147483648
    %v1544 = vmul.f32 %v1543, 1.442695
    %v1545 = vpow.pop %v1544
    %v1546 = vadd.f32 %v1545, 1.0
    %v1547 = vrcp.pop %v1546
    %v1548 = vmul.f32 1.0, %v1547
    %v1549 = vmax.f32 %v1548, 1e-06
    %v1550 = vmin.f32 %v1549, 3.4028235e+38
    %v1553 = vunpack.c.l.s4 1966171168
    %v1554 = vunpack.c.0.s8 %v1553
    %v1555 = vlaneseq
    %v1556 = vshrl.u32 %v1555, 7
    %v1557 = vsub.s32 %v1554, %v1556
    %v1558 = vrot.slane %v1550, %v1557
    %v1559 = vcombine.high %v1558, %v1558
    %v1561 = vunpack.c.l.s4 1966171168
    %v1562 = vunpack.c.0.s8 %v1561
    %v1563 = vlaneseq
    %v1564 = vshrl.u32 %v1563, 7
    %v1565 = vsub.s32 %v1562, %v1564
    %v1566 = vrot.slane %v1558, %v1565
    %v1568 = vunpack.c.l.s4 1966171168
    %v1569 = vunpack.c.0.s8 %v1568
    %v1570 = vlaneseq
    %v1571 = vshrl.u32 %v1570, 7
    %v1572 = vsub.s32 %v1569, %v1571
    %v1573 = vrot.slane %v1559, %v1572
    %v1574 = vcombine.high %v1566, %v1566
    %v1575 = vcombine.high %v1573, %v1573
    %v1576 = vlaneseq
    %v1577 = vshrl.u32 %v1576, 7
    %v1578 = vsub.s32 0, %v1577
    %v1579 = vrot.slane %v1566, %v1578
    %v1580 = vlaneseq
    %v1581 = vshrl.u32 %v1580, 7
    %v1582 = vsub.s32 0, %v1581
    %v1583 = vrot.slane %v1573, %v1582
    %v1584 = vlaneseq
    %v1585 = vshrl.u32 %v1584, 7
    %v1586 = vsub.s32 0, %v1585
    %v1587 = vrot.slane %v1574, %v1586
    %v1588 = vlaneseq
    %v1589 = vshrl.u32 %v1588, 7
    %v1590 = vsub.s32 0, %v1589
    %v1591 = vrot.slane %v1575, %v1590
    %v1596 = vmul.f32 %v1579, %v1094
    %v1597 = vmul.f32 %v1579, %v1095
    %v1598 = vmul.f32 %v1579, %v1096
    %v1599 = vmul.f32 %v1579, %v1097
    %v1600 = vmul.f32 %v1583, %v1098
    %v1601 = vmul.f32 %v1583, %v1099
    %v1602 = vmul.f32 %v1583, %v1100
    %v1603 = vmul.f32 %v1583, %v1101
    %v1604 = vmul.f32 %v1587, %v1102
    %v1605 = vmul.f32 %v1587, %v1103
    %v1606 = vmul.f32 %v1587, %v1104
    %v1607 = vmul.f32 %v1587, %v1105
    %v1608 = vmul.f32 %v1591, %v1106
    %v1609 = vmul.f32 %v1591, %v1107
    %v1610 = vmul.f32 %v1591, %v1108
    %v1611 = vmul.f32 %v1591, %v1109
    %1612 = vst [vmem:[#allocation7] sm:$0xff] %v1596
    %1613 = vst [vmem:[#allocation7 + $0x8] sm:$0xff] %v1597
    %1614 = vst [vmem:[#allocation7 + $0x10] sm:$0xff] %v1598
    %1615 = vst [vmem:[#allocation7 + $0x18] sm:$0xff] %v1599
    %1616 = vst [vmem:[#allocation7 + $0x20] sm:$0xff] %v1600
    %1617 = vst [vmem:[#allocation7 + $0x28] sm:$0xff] %v1601
    %1618 = vst [vmem:[#allocation7 + $0x30] sm:$0xff] %v1602
    %1619 = vst [vmem:[#allocation7 + $0x38] sm:$0xff] %v1603
    %1620 = vst [vmem:[#allocation7 + $0x40] sm:$0xff] %v1604
    %1621 = vst [vmem:[#allocation7 + $0x48] sm:$0xff] %v1605
    %1622 = vst [vmem:[#allocation7 + $0x50] sm:$0xff] %v1606
    %1623 = vst [vmem:[#allocation7 + $0x58] sm:$0xff] %v1607
    %1624 = vst [vmem:[#allocation7 + $0x60] sm:$0xff] %v1608
    %1625 = vst [vmem:[#allocation7 + $0x68] sm:$0xff] %v1609
    %1626 = vst [vmem:[#allocation7 + $0x70] sm:$0xff] %v1610
    %1627 = vst [vmem:[#allocation7 + $0x78] sm:$0xff] %v1611
    // Predicated region
    $region34: #{tpu_custom_call.1} parent=1 // pred_check
      _
    $region35: #{tpu_custom_call.1} parent=1 // pred_check_branch
      %1629 = sbr.rel (0) target = $region37
    $region36: #{tpu_custom_call.1} parent=1 // pred_region
      %s1631 = ssub.s32 2048, 2048
      %1632 = vsyncadd [#allocation4], %s1631
      %s1633 = sshll.u32 [#allocation7], 4
      %s1634 = int_to_ptr.vmem [resolvable:$true] %s1633
      %1639 = dma.vmem_to_hbm [thread:$0]  %s1634, 2048, %s6, [#allocation4], 128, 128, 8
    $region37: #{tpu_custom_call.1} parent=1 // pred_fallthru
      _
    // Predicated region
    $region38: #{tpu_custom_call.1} parent=1 // pred_check
      _
    $region39: #{tpu_custom_call.1} parent=1 // pred_check_branch
      %1641 = sbr.rel (0) target = $region41
    $region40: #{tpu_custom_call.1} parent=1 // pred_region
      %1642 = dma.done [#allocation4], 2048
    $region41: #{tpu_custom_call.1} parent=1 // pred_fallthru
      _
    %1643 = vsyncpa [#allocation3], 1
    %1644 = vsyncpa [#allocation4], 1
    %1645 = vsyncpa [#allocation5], 1

</llo_original>
